<compile_context>
chip_gen: v5e
topology: v5e:2x2
jax: 0.10.0
libtpu: 0.0.40
codegen_flags: <defaults>
</compile_context>

<pallas_src>
import math
import functools

import jax
import jax.numpy as jnp
from jax.experimental import pallas as pl
from jax.experimental.pallas import tpu as pltpu


# ------------------------------------------------------------------ kernel
def fused_transformer_kernel(x0_ref, pe_ref,
                             wq_ref, bq_ref, wk_ref, bk_ref, wv_ref, bv_ref,
                             wo_ref, bo_ref,
                             w1_ref, b1_ref, w2_ref, b2_ref,
                             g1_ref, be1_ref, g2_ref, be2_ref,
                             dw_ref, db_ref,
                             out_ref, *, nlayers, nhead, embed_scale):
    """One batch block (TB batch elements): full forward in VMEM.

    x0_ref : (TB, S, D) f32  token embeddings
    pe_ref : (S, D)     f32  positional encoding (resident)
    weights: resident (L, ...) stacks; matmul weights pre-transposed to
             (in, out); attention weights head-major (leading head axis);
             1/sqrt(dh) folded into wq/bq at pack time.
    out_ref: (TB, S, Vpad) f32 logits, vocab padded to a lane multiple.
    """
    TB, S, D = x0_ref.shape
    Vpad = out_ref.shape[-1]
    dh = D // nhead
    M = TB * S
    eps = 1e-5

    # emb * sqrt(ninp) + positional encoding (dropout = identity in eval)
    x = (x0_ref[...] * embed_scale + pe_ref[...]).reshape(M, D)   # f32 residual

    def layer_norm(y, g, b):
        mu = jnp.mean(y, axis=-1, keepdims=True)
        var = jnp.mean((y - mu) ** 2, axis=-1, keepdims=True)
        return (y - mu) * jax.lax.rsqrt(var + eps) * g + b

    # TODO(synk): static unroll over layers/heads (fine for small nlayers*nhead);
    # switch to lax.fori_loop with dynamic leading-axis weight indexing if large.
    for l in range(nlayers):
        xb = x.astype(jnp.bfloat16)

        # ---- multi-head self attention (src_mask=None path) ----------------
        # TODO(synk): causal src_mask / src_key_padding_mask not implemented.
        attn = jnp.zeros((M, D), jnp.float32)
        for h in range(nhead):
            # head-major weights -> only leading-axis slices, no lane slicing
            q = (jnp.dot(xb, wq_ref[l, h], preferred_element_type=jnp.float32)
                 + bq_ref[l, h]).reshape(TB, S, dh)          # scale folded in
            k = (jnp.dot(xb, wk_ref[l, h], preferred_element_type=jnp.float32)
                 + bk_ref[l, h]).reshape(TB, S, dh)
            v = (jnp.dot(xb, wv_ref[l, h], preferred_element_type=jnp.float32)
                 + bv_ref[l, h]).reshape(TB, S, dh)
            s = jnp.einsum('bsk,btk->bst', q.astype(jnp.bfloat16),
                           k.astype(jnp.bfloat16),
                           preferred_element_type=jnp.float32)      # (TB,S,S)
            s = s - jnp.max(s, axis=-1, keepdims=True)
            p = jnp.exp(s)
            p = p * pl.reciprocal(jnp.sum(p, axis=-1, keepdims=True),
                                  approx=True)
            o = jnp.einsum('bst,btk->bsk', p.astype(jnp.bfloat16),
                           v.astype(jnp.bfloat16),
                           preferred_element_type=jnp.float32)      # (TB,S,dh)
            # fold the output projection per head (no concatenate)
            attn = attn + jnp.dot(o.reshape(M, dh).astype(jnp.bfloat16),
                                  wo_ref[l, h],
                                  preferred_element_type=jnp.float32)
        attn = attn + bo_ref[l]

        y = layer_norm(x + attn, g1_ref[l], be1_ref[l])

        # ---- feed-forward (ReLU) -------------------------------------------
        ff = jnp.dot(y.astype(jnp.bfloat16), w1_ref[l],
                     preferred_element_type=jnp.float32) + b1_ref[l]
        ff = jnp.maximum(ff, 0.0)
        ff = jnp.dot(ff.astype(jnp.bfloat16), w2_ref[l],
                     preferred_element_type=jnp.float32) + b2_ref[l]

        x = layer_norm(y + ff, g2_ref[l], be2_ref[l])

    # ---- fused decoder: lane-dense (Vpad multiple of 128) store -------------
    # TODO(synk): at D < 128 the residual/VPU ops use only D of 128 lanes; a
    # D-padded variant (masked LayerNorm) would be needed for full lane use.
    logits = (jnp.dot(x.astype(jnp.bfloat16), dw_ref[...],
                      preferred_element_type=jnp.float32) + db_ref[...])
    out_ref[...] = logits.reshape(TB, S, Vpad)


# ------------------------------------------------------------------ packing
def make_positional_encoding(d_model, max_len=512):
    position = jnp.arange(max_len, dtype=jnp.float32)[:, None]
    div_term = jnp.exp(jnp.arange(0, d_model, 2, dtype=jnp.float32)
                       * (-math.log(10000.0) / d_model))
    pe = jnp.zeros((max_len, d_model), jnp.float32)
    pe = pe.at[:, 0::2].set(jnp.sin(position * div_term))
    pe = pe.at[:, 1::2].set(jnp.cos(position * div_term))
    return pe                                            # (max_len, d_model)


def init_params(key, ntokens, ninp, nhid, nlayers):
    """PyTorch-layout parameters (weights stored as (out, in))."""
    initrange = 0.1
    keys = jax.random.split(key, 2 + 6 * nlayers)
    params = {
        "emb": jax.random.uniform(keys[0], (ntokens, ninp), jnp.float32,
                                  -initrange, initrange),
        "dec_w": jax.random.uniform(keys[1], (ntokens, ninp), jnp.float32,
                                    -initrange, initrange),
        "dec_b": jnp.zeros((1, ntokens), jnp.float32),
        "layers": [],
    }
    for l in range(nlayers):
        k = keys[2 + 6 * l: 2 + 6 * (l + 1)]
        params["layers"].append(dict(
            wqkv=jax.random.normal(k[0], (3 * ninp, ninp), jnp.float32) * 0.05,
            bqkv=jax.random.normal(k[1], (1, 3 * ninp), jnp.float32) * 0.02,
            wo=jax.random.normal(k[2], (ninp, ninp), jnp.float32) * 0.05,
            bo=jnp.zeros((1, ninp), jnp.float32),
            w1=jax.random.normal(k[3], (nhid, ninp), jnp.float32) * 0.05,
            b1=jax.random.normal(k[4], (1, nhid), jnp.float32) * 0.02,
            w2=jax.random.normal(k[5], (ninp, nhid), jnp.float32) * 0.05,
            b2=jnp.zeros((1, ninp), jnp.float32),
            g1=jnp.ones((1, ninp), jnp.float32),
            be1=jnp.zeros((1, ninp), jnp.float32),
            g2=jnp.ones((1, ninp), jnp.float32),
            be2=jnp.zeros((1, ninp), jnp.float32),
        ))
    return params


def pack_params(params, *, nhead):
    """One-time host-side packing: transposes, head-major attention weights,
    bf16 casts, attention-scale folding, vocab padding. Done OUTSIDE the
    forward so no per-call repacking cost."""
    lys = params["layers"]
    ntokens, D = params["emb"].shape
    dh = D // nhead
    att_scale = 1.0 / math.sqrt(dh)

    def head_major_in(w, scale=1.0):
        # (D_out, D_in) -> (nhead, D_in, dh): per-head column block, pre-transposed
        return w.reshape(nhead, dh, D).transpose(0, 2, 1) * scale

    wq, bq, wk, bk, wv, bv, wo, bo = [], [], [], [], [], [], [], []
    w1, b1, w2, b2, g1, be1, g2, be2 = [], [], [], [], [], [], [], []
    for lp in lys:
        Wq, Wk, Wv = jnp.split(lp["wqkv"], 3, axis=0)        # each (D, D)
        bq_, bk_, bv_ = jnp.split(lp["bqkv"][0], 3)          # each (D,)
        wq.append(head_major_in(Wq, att_scale))              # scale folded
        wk.append(head_major_in(Wk))
        wv.append(head_major_in(Wv))
        bq.append((bq_ * att_scale).reshape(nhead, 1, dh))
        bk.append(bk_.reshape(nhead, 1, dh))
        bv.append(bv_.reshape(nhead, 1, dh))
        wo.append(lp["wo"].T.reshape(nhead, dh, D))          # head-major rows
        bo.append(lp["bo"])
        w1.append(lp["w1"].T); b1.append(lp["b1"])
        w2.append(lp["w2"].T); b2.append(lp["b2"])
        g1.append(lp["g1"]); be1.append(lp["be1"])
        g2.append(lp["g2"]); be2.append(lp["be2"])

    fstack = lambda xs: jnp.stack(xs)                         # f32 stacks
    bstack = lambda xs: jnp.stack(xs).astype(jnp.bfloat16)    # bf16 MXU weights

    Vpad = ((ntokens + 127) // 128) * 128
    dec_w = jnp.pad(params["dec_w"].T,
                    ((0, 0), (0, Vpad - ntokens))).astype(jnp.bfloat16)
    dec_b = jnp.pad(params["dec_b"], ((0, 0), (0, Vpad - ntokens)))

    return dict(
        emb=params["emb"], ntokens=ntokens, Vpad=Vpad,
        nlayers=len(lys), nhead=nhead,
        weights=(bstack(wq), fstack(bq), bstack(wk), fstack(bk),
                 bstack(wv), fstack(bv), bstack(wo), fstack(bo),
                 bstack(w1), fstack(b1), bstack(w2), fstack(b2),
                 fstack(g1), fstack(be1), fstack(g2), fstack(be2),
                 dec_w, dec_b),
    )


# ------------------------------------------------------------------ forward
def _vmem_budget():
    # generation-aware cap: ~3/4 of physical (v7x: 64 MiB, v5e/v6e: 128 MiB)
    try:
        cap = int(pltpu.get_tpu_info().vmem_capacity_bytes)
    except Exception:
        cap = 64 << 20
    return max(16 << 20, min((cap * 3) // 4, 100 << 20))


def transformer_forward(packed, src, pe):
    # src: (S, B) int32.  NOTE: src[-512:] + pe[:S] matches the PyTorch module
    # only when the sequence fits max_len (positions re-based otherwise).
    src = src[-512:, :]
    S, B = src.shape
    D = packed["emb"].shape[1]
    V, Vpad = packed["ntokens"], packed["Vpad"]
    L, nhead = packed["nlayers"], packed["nhead"]
    weights = packed["weights"]
    H = weights[8].shape[-1]                                   # w1: (L, D, H)

    # Embedding gather stays in plain JAX (no clean Pallas gather); the
    # sqrt(ninp) scale and pos-enc add happen inside the fused kernel.
    x0 = jnp.transpose(jnp.take(packed["emb"], src, axis=0), (1, 0, 2))  # (B,S,D)
    pe_s = pe[:S]

    # ---- batch folding: TB batch elements per grid step ---------------------
    # (TB > 1 requires S % 8 == 0 so in-kernel leading-dim reshapes are free)
    TB = max(1, min(B, 256 // max(S, 1))) if S % 8 == 0 else 1
    if B > 1 and -(-B // TB) < 2:
        TB = (B + 1) // 2            # >= 2 batch blocks keeps both v7x TCs busy

    weight_bytes = sum(int(a.size) * a.dtype.itemsize for a in weights)
    budget = _vmem_budget()

    def vmem_needed(tb):
        act = 2 * tb * S * D * 4                      # double-buffered input
        out = 2 * tb * S * Vpad * 4                   # double-buffered output
        tmp = tb * S * (6 * D + 2 * S + 2 * H + Vpad) * 4
        return act + out + tmp + 2 * weight_bytes + S * D * 4

    while TB > 1 and vmem_needed(TB) > budget:
        TB = max(1, TB // 2)

    NB = -(-B // TB)
    Bp = NB * TB
    if Bp != B:
        x0 = jnp.pad(x0, ((0, Bp - B), (0, 0), (0, 0)))

    def resident(arr):                                 # whole array, VMEM-resident
        nd = arr.ndim
        return pl.BlockSpec(arr.shape, lambda i, nd=nd: (0,) * nd)

    flops = Bp * (L * (8 * S * D * D + 4 * S * S * D + 4 * S * D * H)
                  + 2 * S * D * Vpad)
    cost = pl.CostEstimate(
        flops=int(flops),
        transcendentals=int(Bp * L * (nhead * S * S + 3 * S)),
        bytes_accessed=int(x0.size * 4 + Bp * S * Vpad * 4
                           + weight_bytes + pe_s.size * 4))

    out = pl.pallas_call(
        functools.partial(fused_transformer_kernel, nlayers=L, nhead=nhead,
                          embed_scale=math.sqrt(D)),
        out_shape=jax.ShapeDtypeStruct((Bp, S, Vpad), jnp.float32),
        grid=(NB,),
        in_specs=[pl.BlockSpec((TB, S, D), lambda i: (i, 0, 0)),
                  resident(pe_s)] + [resident(a) for a in weights],
        out_specs=pl.BlockSpec((TB, S, Vpad), lambda i: (i, 0, 0)),
        compiler_params=pltpu.CompilerParams(
            dimension_semantics=("parallel",),
            vmem_limit_bytes=int(budget)),
        cost_estimate=cost,
    )(x0, pe_s, *weights)

    # un-pad batch & vocab; restore (S, B, ntokens)
    return jnp.transpose(out[:B, :, :V], (1, 0, 2))


# ------------------------------------------------------------------ main
if __name__ == "__main__":
    ntokens, ninp, nhead, nhid, nlayers = 50, 32, 2, 64, 2
    S, B = 8, 2

    key = jax.random.PRNGKey(0)
    k_param, k_src = jax.random.split(key)

    params = init_params(k_param, ntokens, ninp, nhid, nlayers)
    packed = pack_params(params, nhead=nhead)
    pe = make_positional_encoding(ninp, max_len=512)
    src = jax.random.randint(k_src, (S, B), 0, ntokens, dtype=jnp.int32)

    out = transformer_forward(packed, src, pe)
    out = jax.block_until_ready(out)
    assert out.shape == (S, B, ntokens), out.shape
    assert bool(jnp.all(jnp.isfinite(out)))
    print("KERNEL_OK")
</pallas_src>

<mosaic_0001>
module attributes {stable_mosaic.version = 11 : i64} {
  func.func @fused_transformer_kernel(%arg0: i32, %arg1: memref<1x8x32xf32, #tpu.memory_space<vmem>>, %arg2: memref<8x32xf32, #tpu.memory_space<vmem>>, %arg3: memref<2x2x32x16xbf16, #tpu.memory_space<vmem>>, %arg4: memref<2x2x1x16xf32, #tpu.memory_space<vmem>>, %arg5: memref<2x2x32x16xbf16, #tpu.memory_space<vmem>>, %arg6: memref<2x2x1x16xf32, #tpu.memory_space<vmem>>, %arg7: memref<2x2x32x16xbf16, #tpu.memory_space<vmem>>, %arg8: memref<2x2x1x16xf32, #tpu.memory_space<vmem>>, %arg9: memref<2x2x16x32xbf16, #tpu.memory_space<vmem>>, %arg10: memref<2x1x32xf32, #tpu.memory_space<vmem>>, %arg11: memref<2x32x64xbf16, #tpu.memory_space<vmem>>, %arg12: memref<2x1x64xf32, #tpu.memory_space<vmem>>, %arg13: memref<2x64x32xbf16, #tpu.memory_space<vmem>>, %arg14: memref<2x1x32xf32, #tpu.memory_space<vmem>>, %arg15: memref<2x1x32xf32, #tpu.memory_space<vmem>>, %arg16: memref<2x1x32xf32, #tpu.memory_space<vmem>>, %arg17: memref<2x1x32xf32, #tpu.memory_space<vmem>>, %arg18: memref<2x1x32xf32, #tpu.memory_space<vmem>>, %arg19: memref<32x128xbf16, #tpu.memory_space<vmem>>, %arg20: memref<1x128xf32, #tpu.memory_space<vmem>>, %arg21: memref<1x8x128xf32, #tpu.memory_space<vmem>>) attributes {dimension_semantics = [#tpu.dimension_semantics<parallel>], iteration_bounds = array<i64: 2>, scalar_prefetch = 0 : i64, scratch_operands = 0 : i64, tpu.core_type = #tpu.core_type<tc>, window_params = [{transform_indices = @transform_0, window_bounds = array<i64: 1, 8, 32>}, {pipeline_mode = #tpu.pipeline_mode<synchronous>, transform_indices = @transform_1, window_bounds = array<i64: 8, 32>}, {pipeline_mode = #tpu.pipeline_mode<synchronous>, transform_indices = @transform_2, window_bounds = array<i64: 2, 2, 32, 16>}, {pipeline_mode = #tpu.pipeline_mode<synchronous>, transform_indices = @transform_3, window_bounds = array<i64: 2, 2, 1, 16>}, {pipeline_mode = #tpu.pipeline_mode<synchronous>, transform_indices = @transform_4, window_bounds = array<i64: 2, 2, 32, 16>}, {pipeline_mode = #tpu.pipeline_mode<synchronous>, transform_indices = @transform_5, window_bounds = array<i64: 2, 2, 1, 16>}, {pipeline_mode = #tpu.pipeline_mode<synchronous>, transform_indices = @transform_6, window_bounds = array<i64: 2, 2, 32, 16>}, {pipeline_mode = #tpu.pipeline_mode<synchronous>, transform_indices = @transform_7, window_bounds = array<i64: 2, 2, 1, 16>}, {pipeline_mode = #tpu.pipeline_mode<synchronous>, transform_indices = @transform_8, window_bounds = array<i64: 2, 2, 16, 32>}, {pipeline_mode = #tpu.pipeline_mode<synchronous>, transform_indices = @transform_9, window_bounds = array<i64: 2, 1, 32>}, {pipeline_mode = #tpu.pipeline_mode<synchronous>, transform_indices = @transform_10, window_bounds = array<i64: 2, 32, 64>}, {pipeline_mode = #tpu.pipeline_mode<synchronous>, transform_indices = @transform_11, window_bounds = array<i64: 2, 1, 64>}, {pipeline_mode = #tpu.pipeline_mode<synchronous>, transform_indices = @transform_12, window_bounds = array<i64: 2, 64, 32>}, {pipeline_mode = #tpu.pipeline_mode<synchronous>, transform_indices = @transform_13, window_bounds = array<i64: 2, 1, 32>}, {pipeline_mode = #tpu.pipeline_mode<synchronous>, transform_indices = @transform_14, window_bounds = array<i64: 2, 1, 32>}, {pipeline_mode = #tpu.pipeline_mode<synchronous>, transform_indices = @transform_15, window_bounds = array<i64: 2, 1, 32>}, {pipeline_mode = #tpu.pipeline_mode<synchronous>, transform_indices = @transform_16, window_bounds = array<i64: 2, 1, 32>}, {pipeline_mode = #tpu.pipeline_mode<synchronous>, transform_indices = @transform_17, window_bounds = array<i64: 2, 1, 32>}, {pipeline_mode = #tpu.pipeline_mode<synchronous>, transform_indices = @transform_18, window_bounds = array<i64: 32, 128>}, {pipeline_mode = #tpu.pipeline_mode<synchronous>, transform_indices = @transform_19, window_bounds = array<i64: 1, 128>}, {transform_indices = @transform_20, window_bounds = array<i64: 1, 8, 128>}]} {
    %c0 = arith.constant 0 : index
    %c0_0 = arith.constant 0 : index
    %c0_1 = arith.constant 0 : index
    %0 = vector.load %arg1[%c0, %c0_0, %c0_1] : memref<1x8x32xf32, #tpu.memory_space<vmem>>, vector<1x8x32xf32>
    %cst = arith.constant 5.65685415 : f32
    %1 = vector.broadcast %cst : f32 to vector<1x8x32xf32>
    %2 = arith.mulf %0, %1 : vector<1x8x32xf32>
    %c0_2 = arith.constant 0 : index
    %c0_3 = arith.constant 0 : index
    %3 = vector.load %arg2[%c0_2, %c0_3] : memref<8x32xf32, #tpu.memory_space<vmem>>, vector<8x32xf32>
    %4 = vector.shape_cast %3 : vector<8x32xf32> to vector<1x8x32xf32>
    %5 = arith.addf %2, %4 : vector<1x8x32xf32>
    %6 = vector.shape_cast %5 : vector<1x8x32xf32> to vector<8x32xf32>
    %7 = arith.truncf %6 : vector<8x32xf32> to vector<8x32xbf16>
    %cst_4 = arith.constant 0.000000e+00 : f32
    %8 = vector.broadcast %cst_4 : f32 to vector<8x32xf32>
    %c0_5 = arith.constant 0 : index
    %c0_6 = arith.constant 0 : index
    %c0_7 = arith.constant 0 : index
    %c0_8 = arith.constant 0 : index
    %9 = vector.load %arg3[%c0_5, %c0_6, %c0_7, %c0_8] : memref<2x2x32x16xbf16, #tpu.memory_space<vmem>>, vector<1x1x32x16xbf16>
    %10 = vector.shape_cast %9 : vector<1x1x32x16xbf16> to vector<32x16xbf16>
    %cst_9 = arith.constant dense<0.000000e+00> : vector<8x16xf32>
    %11 = tpu.matmul %7, %10, %cst_9 {dimension_numbers = #tpu.dot_dimension_numbers<[1], [0], [0], [1], [0, 0, 1, 1], [], []>} : vector<8x32xbf16>, vector<32x16xbf16>, vector<8x16xf32> -> vector<8x16xf32>
    %c0_10 = arith.constant 0 : index
    %c0_11 = arith.constant 0 : index
    %c0_12 = arith.constant 0 : index
    %c0_13 = arith.constant 0 : index
    %12 = vector.load %arg4[%c0_10, %c0_11, %c0_12, %c0_13] : memref<2x2x1x16xf32, #tpu.memory_space<vmem>>, vector<1x1x1x16xf32>
    %13 = vector.shape_cast %12 : vector<1x1x1x16xf32> to vector<1x16xf32>
    %14 = vector.broadcast %13 : vector<1x16xf32> to vector<8x16xf32>
    %15 = arith.addf %11, %14 : vector<8x16xf32>
    %16 = vector.shape_cast %15 : vector<8x16xf32> to vector<1x8x16xf32>
    %c0_14 = arith.constant 0 : index
    %c0_15 = arith.constant 0 : index
    %c0_16 = arith.constant 0 : index
    %c0_17 = arith.constant 0 : index
    %17 = vector.load %arg5[%c0_14, %c0_15, %c0_16, %c0_17] : memref<2x2x32x16xbf16, #tpu.memory_space<vmem>>, vector<1x1x32x16xbf16>
    %18 = vector.shape_cast %17 : vector<1x1x32x16xbf16> to vector<32x16xbf16>
    %cst_18 = arith.constant dense<0.000000e+00> : vector<8x16xf32>
    %19 = tpu.matmul %7, %18, %cst_18 {dimension_numbers = #tpu.dot_dimension_numbers<[1], [0], [0], [1], [0, 0, 1, 1], [], []>} : vector<8x32xbf16>, vector<32x16xbf16>, vector<8x16xf32> -> vector<8x16xf32>
    %c0_19 = arith.constant 0 : index
    %c0_20 = arith.constant 0 : index
    %c0_21 = arith.constant 0 : index
    %c0_22 = arith.constant 0 : index
    %20 = vector.load %arg6[%c0_19, %c0_20, %c0_21, %c0_22] : memref<2x2x1x16xf32, #tpu.memory_space<vmem>>, vector<1x1x1x16xf32>
    %21 = vector.shape_cast %20 : vector<1x1x1x16xf32> to vector<1x16xf32>
    %22 = vector.broadcast %21 : vector<1x16xf32> to vector<8x16xf32>
    %23 = arith.addf %19, %22 : vector<8x16xf32>
    %24 = vector.shape_cast %23 : vector<8x16xf32> to vector<1x8x16xf32>
    %c0_23 = arith.constant 0 : index
    %c0_24 = arith.constant 0 : index
    %c0_25 = arith.constant 0 : index
    %c0_26 = arith.constant 0 : index
    %25 = vector.load %arg7[%c0_23, %c0_24, %c0_25, %c0_26] : memref<2x2x32x16xbf16, #tpu.memory_space<vmem>>, vector<1x1x32x16xbf16>
    %26 = vector.shape_cast %25 : vector<1x1x32x16xbf16> to vector<32x16xbf16>
    %cst_27 = arith.constant dense<0.000000e+00> : vector<8x16xf32>
    %27 = tpu.matmul %7, %26, %cst_27 {dimension_numbers = #tpu.dot_dimension_numbers<[1], [0], [0], [1], [0, 0, 1, 1], [], []>} : vector<8x32xbf16>, vector<32x16xbf16>, vector<8x16xf32> -> vector<8x16xf32>
    %c0_28 = arith.constant 0 : index
    %c0_29 = arith.constant 0 : index
    %c0_30 = arith.constant 0 : index
    %c0_31 = arith.constant 0 : index
    %28 = vector.load %arg8[%c0_28, %c0_29, %c0_30, %c0_31] : memref<2x2x1x16xf32, #tpu.memory_space<vmem>>, vector<1x1x1x16xf32>
    %29 = vector.shape_cast %28 : vector<1x1x1x16xf32> to vector<1x16xf32>
    %30 = vector.broadcast %29 : vector<1x16xf32> to vector<8x16xf32>
    %31 = arith.addf %27, %30 : vector<8x16xf32>
    %32 = vector.shape_cast %31 : vector<8x16xf32> to vector<1x8x16xf32>
    %33 = arith.truncf %16 : vector<1x8x16xf32> to vector<1x8x16xbf16>
    %34 = arith.truncf %24 : vector<1x8x16xf32> to vector<1x8x16xbf16>
    "tpu.trace_start"() <{level = 10 : i32, message = "bsk,btk->bst"}> : () -> ()
    %cst_32 = arith.constant dense<0.000000e+00> : vector<1x8x8xf32>
    %35 = tpu.matmul %33, %34, %cst_32 {dimension_numbers = #tpu.dot_dimension_numbers<[2], [2], [1], [1], [0, 0, 0, 1, 1, 1], [0], [0]>} : vector<1x8x16xbf16>, vector<1x8x16xbf16>, vector<1x8x8xf32> -> vector<1x8x8xf32>
    "tpu.trace_stop"() : () -> ()
    %cst_33 = arith.constant dense<0xFF800000> : vector<1x8xf32>
    %36 = vector.multi_reduction <maximumf>, %35, %cst_33 [2] : vector<1x8x8xf32> to vector<1x8xf32>
    %37 = vector.shape_cast %36 : vector<1x8xf32> to vector<1x8x1xf32>
    %38 = vector.broadcast %37 : vector<1x8x1xf32> to vector<1x8x8xf32>
    %39 = arith.subf %35, %38 : vector<1x8x8xf32>
    %40 = math.exp %39 : vector<1x8x8xf32>
    %cst_34 = arith.constant dense<0.000000e+00> : vector<1x8xf32>
    %41 = vector.multi_reduction <add>, %40, %cst_34 [2] : vector<1x8x8xf32> to vector<1x8xf32>
    %42 = vector.shape_cast %41 : vector<1x8xf32> to vector<1x8x1xf32>
    %43 = tpu.reciprocal %42 {approx = true} : vector<1x8x1xf32> -> vector<1x8x1xf32>
    %44 = vector.broadcast %43 : vector<1x8x1xf32> to vector<1x8x8xf32>
    %45 = arith.mulf %40, %44 : vector<1x8x8xf32>
    %46 = arith.truncf %45 : vector<1x8x8xf32> to vector<1x8x8xbf16>
    %47 = arith.truncf %32 : vector<1x8x16xf32> to vector<1x8x16xbf16>
    "tpu.trace_start"() <{level = 10 : i32, message = "bst,btk->bsk"}> : () -> ()
    %cst_35 = arith.constant dense<0.000000e+00> : vector<1x8x16xf32>
    %48 = tpu.matmul %46, %47, %cst_35 {dimension_numbers = #tpu.dot_dimension_numbers<[2], [1], [1], [2], [0, 0, 0, 1, 1, 2], [0], [0]>} : vector<1x8x8xbf16>, vector<1x8x16xbf16>, vector<1x8x16xf32> -> vector<1x8x16xf32>
    "tpu.trace_stop"() : () -> ()
    %49 = vector.shape_cast %48 : vector<1x8x16xf32> to vector<8x16xf32>
    %50 = arith.truncf %49 : vector<8x16xf32> to vector<8x16xbf16>
    %c0_36 = arith.constant 0 : index
    %c0_37 = arith.constant 0 : index
    %c0_38 = arith.constant 0 : index
    %c0_39 = arith.constant 0 : index
    %51 = vector.load %arg9[%c0_36, %c0_37, %c0_38, %c0_39] : memref<2x2x16x32xbf16, #tpu.memory_space<vmem>>, vector<1x1x16x32xbf16>
    %52 = vector.shape_cast %51 : vector<1x1x16x32xbf16> to vector<16x32xbf16>
    %cst_40 = arith.constant dense<0.000000e+00> : vector<8x32xf32>
    %53 = tpu.matmul %50, %52, %cst_40 {dimension_numbers = #tpu.dot_dimension_numbers<[1], [0], [0], [1], [0, 0, 1, 1], [], []>} : vector<8x16xbf16>, vector<16x32xbf16>, vector<8x32xf32> -> vector<8x32xf32>
    %54 = arith.addf %8, %53 : vector<8x32xf32>
    %c0_41 = arith.constant 0 : index
    %c1 = arith.constant 1 : index
    %c0_42 = arith.constant 0 : index
    %c0_43 = arith.constant 0 : index
    %55 = vector.load %arg3[%c0_41, %c1, %c0_42, %c0_43] : memref<2x2x32x16xbf16, #tpu.memory_space<vmem>>, vector<1x1x32x16xbf16>
    %56 = vector.shape_cast %55 : vector<1x1x32x16xbf16> to vector<32x16xbf16>
    %cst_44 = arith.constant dense<0.000000e+00> : vector<8x16xf32>
    %57 = tpu.matmul %7, %56, %cst_44 {dimension_numbers = #tpu.dot_dimension_numbers<[1], [0], [0], [1], [0, 0, 1, 1], [], []>} : vector<8x32xbf16>, vector<32x16xbf16>, vector<8x16xf32> -> vector<8x16xf32>
    %c0_45 = arith.constant 0 : index
    %c1_46 = arith.constant 1 : index
    %c0_47 = arith.constant 0 : index
    %c0_48 = arith.constant 0 : index
    %58 = vector.load %arg4[%c0_45, %c1_46, %c0_47, %c0_48] : memref<2x2x1x16xf32, #tpu.memory_space<vmem>>, vector<1x1x1x16xf32>
    %59 = vector.shape_cast %58 : vector<1x1x1x16xf32> to vector<1x16xf32>
    %60 = vector.broadcast %59 : vector<1x16xf32> to vector<8x16xf32>
    %61 = arith.addf %57, %60 : vector<8x16xf32>
    %62 = vector.shape_cast %61 : vector<8x16xf32> to vector<1x8x16xf32>
    %c0_49 = arith.constant 0 : index
    %c1_50 = arith.constant 1 : index
    %c0_51 = arith.constant 0 : index
    %c0_52 = arith.constant 0 : index
    %63 = vector.load %arg5[%c0_49, %c1_50, %c0_51, %c0_52] : memref<2x2x32x16xbf16, #tpu.memory_space<vmem>>, vector<1x1x32x16xbf16>
    %64 = vector.shape_cast %63 : vector<1x1x32x16xbf16> to vector<32x16xbf16>
    %cst_53 = arith.constant dense<0.000000e+00> : vector<8x16xf32>
    %65 = tpu.matmul %7, %64, %cst_53 {dimension_numbers = #tpu.dot_dimension_numbers<[1], [0], [0], [1], [0, 0, 1, 1], [], []>} : vector<8x32xbf16>, vector<32x16xbf16>, vector<8x16xf32> -> vector<8x16xf32>
    %c0_54 = arith.constant 0 : index
    %c1_55 = arith.constant 1 : index
    %c0_56 = arith.constant 0 : index
    %c0_57 = arith.constant 0 : index
    %66 = vector.load %arg6[%c0_54, %c1_55, %c0_56, %c0_57] : memref<2x2x1x16xf32, #tpu.memory_space<vmem>>, vector<1x1x1x16xf32>
    %67 = vector.shape_cast %66 : vector<1x1x1x16xf32> to vector<1x16xf32>
    %68 = vector.broadcast %67 : vector<1x16xf32> to vector<8x16xf32>
    %69 = arith.addf %65, %68 : vector<8x16xf32>
    %70 = vector.shape_cast %69 : vector<8x16xf32> to vector<1x8x16xf32>
    %c0_58 = arith.constant 0 : index
    %c1_59 = arith.constant 1 : index
    %c0_60 = arith.constant 0 : index
    %c0_61 = arith.constant 0 : index
    %71 = vector.load %arg7[%c0_58, %c1_59, %c0_60, %c0_61] : memref<2x2x32x16xbf16, #tpu.memory_space<vmem>>, vector<1x1x32x16xbf16>
    %72 = vector.shape_cast %71 : vector<1x1x32x16xbf16> to vector<32x16xbf16>
    %cst_62 = arith.constant dense<0.000000e+00> : vector<8x16xf32>
    %73 = tpu.matmul %7, %72, %cst_62 {dimension_numbers = #tpu.dot_dimension_numbers<[1], [0], [0], [1], [0, 0, 1, 1], [], []>} : vector<8x32xbf16>, vector<32x16xbf16>, vector<8x16xf32> -> vector<8x16xf32>
    %c0_63 = arith.constant 0 : index
    %c1_64 = arith.constant 1 : index
    %c0_65 = arith.constant 0 : index
    %c0_66 = arith.constant 0 : index
    %74 = vector.load %arg8[%c0_63, %c1_64, %c0_65, %c0_66] : memref<2x2x1x16xf32, #tpu.memory_space<vmem>>, vector<1x1x1x16xf32>
    %75 = vector.shape_cast %74 : vector<1x1x1x16xf32> to vector<1x16xf32>
    %76 = vector.broadcast %75 : vector<1x16xf32> to vector<8x16xf32>
    %77 = arith.addf %73, %76 : vector<8x16xf32>
    %78 = vector.shape_cast %77 : vector<8x16xf32> to vector<1x8x16xf32>
    %79 = arith.truncf %62 : vector<1x8x16xf32> to vector<1x8x16xbf16>
    %80 = arith.truncf %70 : vector<1x8x16xf32> to vector<1x8x16xbf16>
    "tpu.trace_start"() <{level = 10 : i32, message = "bsk,btk->bst"}> : () -> ()
    %cst_67 = arith.constant dense<0.000000e+00> : vector<1x8x8xf32>
    %81 = tpu.matmul %79, %80, %cst_67 {dimension_numbers = #tpu.dot_dimension_numbers<[2], [2], [1], [1], [0, 0, 0, 1, 1, 1], [0], [0]>} : vector<1x8x16xbf16>, vector<1x8x16xbf16>, vector<1x8x8xf32> -> vector<1x8x8xf32>
    "tpu.trace_stop"() : () -> ()
    %cst_68 = arith.constant dense<0xFF800000> : vector<1x8xf32>
    %82 = vector.multi_reduction <maximumf>, %81, %cst_68 [2] : vector<1x8x8xf32> to vector<1x8xf32>
    %83 = vector.shape_cast %82 : vector<1x8xf32> to vector<1x8x1xf32>
    %84 = vector.broadcast %83 : vector<1x8x1xf32> to vector<1x8x8xf32>
    %85 = arith.subf %81, %84 : vector<1x8x8xf32>
    %86 = math.exp %85 : vector<1x8x8xf32>
    %cst_69 = arith.constant dense<0.000000e+00> : vector<1x8xf32>
    %87 = vector.multi_reduction <add>, %86, %cst_69 [2] : vector<1x8x8xf32> to vector<1x8xf32>
    %88 = vector.shape_cast %87 : vector<1x8xf32> to vector<1x8x1xf32>
    %89 = tpu.reciprocal %88 {approx = true} : vector<1x8x1xf32> -> vector<1x8x1xf32>
    %90 = vector.broadcast %89 : vector<1x8x1xf32> to vector<1x8x8xf32>
    %91 = arith.mulf %86, %90 : vector<1x8x8xf32>
    %92 = arith.truncf %91 : vector<1x8x8xf32> to vector<1x8x8xbf16>
    %93 = arith.truncf %78 : vector<1x8x16xf32> to vector<1x8x16xbf16>
    "tpu.trace_start"() <{level = 10 : i32, message = "bst,btk->bsk"}> : () -> ()
    %cst_70 = arith.constant dense<0.000000e+00> : vector<1x8x16xf32>
    %94 = tpu.matmul %92, %93, %cst_70 {dimension_numbers = #tpu.dot_dimension_numbers<[2], [1], [1], [2], [0, 0, 0, 1, 1, 2], [0], [0]>} : vector<1x8x8xbf16>, vector<1x8x16xbf16>, vector<1x8x16xf32> -> vector<1x8x16xf32>
    "tpu.trace_stop"() : () -> ()
    %95 = vector.shape_cast %94 : vector<1x8x16xf32> to vector<8x16xf32>
    %96 = arith.truncf %95 : vector<8x16xf32> to vector<8x16xbf16>
    %c0_71 = arith.constant 0 : index
    %c1_72 = arith.constant 1 : index
    %c0_73 = arith.constant 0 : index
    %c0_74 = arith.constant 0 : index
    %97 = vector.load %arg9[%c0_71, %c1_72, %c0_73, %c0_74] : memref<2x2x16x32xbf16, #tpu.memory_space<vmem>>, vector<1x1x16x32xbf16>
    %98 = vector.shape_cast %97 : vector<1x1x16x32xbf16> to vector<16x32xbf16>
    %cst_75 = arith.constant dense<0.000000e+00> : vector<8x32xf32>
    %99 = tpu.matmul %96, %98, %cst_75 {dimension_numbers = #tpu.dot_dimension_numbers<[1], [0], [0], [1], [0, 0, 1, 1], [], []>} : vector<8x16xbf16>, vector<16x32xbf16>, vector<8x32xf32> -> vector<8x32xf32>
    %100 = arith.addf %54, %99 : vector<8x32xf32>
    %c0_76 = arith.constant 0 : index
    %c0_77 = arith.constant 0 : index
    %c0_78 = arith.constant 0 : index
    %101 = vector.load %arg10[%c0_76, %c0_77, %c0_78] : memref<2x1x32xf32, #tpu.memory_space<vmem>>, vector<1x1x32xf32>
    %102 = vector.shape_cast %101 : vector<1x1x32xf32> to vector<1x32xf32>
    %103 = vector.broadcast %102 : vector<1x32xf32> to vector<8x32xf32>
    %104 = arith.addf %100, %103 : vector<8x32xf32>
    %105 = arith.addf %6, %104 : vector<8x32xf32>
    %c0_79 = arith.constant 0 : index
    %c0_80 = arith.constant 0 : index
    %c0_81 = arith.constant 0 : index
    %106 = vector.load %arg15[%c0_79, %c0_80, %c0_81] : memref<2x1x32xf32, #tpu.memory_space<vmem>>, vector<1x1x32xf32>
    %107 = vector.shape_cast %106 : vector<1x1x32xf32> to vector<1x32xf32>
    %c0_82 = arith.constant 0 : index
    %c0_83 = arith.constant 0 : index
    %c0_84 = arith.constant 0 : index
    %108 = vector.load %arg16[%c0_82, %c0_83, %c0_84] : memref<2x1x32xf32, #tpu.memory_space<vmem>>, vector<1x1x32xf32>
    %109 = vector.shape_cast %108 : vector<1x1x32xf32> to vector<1x32xf32>
    %cst_85 = arith.constant dense<0.000000e+00> : vector<8xf32>
    %110 = vector.multi_reduction <add>, %105, %cst_85 [1] : vector<8x32xf32> to vector<8xf32>
    %111 = vector.shape_cast %110 : vector<8xf32> to vector<8x1xf32>
    %cst_86 = arith.constant 3.200000e+01 : f32
    %112 = vector.broadcast %cst_86 : f32 to vector<8x1xf32>
    %113 = arith.divf %111, %112 : vector<8x1xf32>
    %114 = vector.broadcast %113 : vector<8x1xf32> to vector<8x32xf32>
    %115 = arith.subf %105, %114 : vector<8x32xf32>
    %116 = arith.mulf %115, %115 : vector<8x32xf32>
    %cst_87 = arith.constant dense<0.000000e+00> : vector<8xf32>
    %117 = vector.multi_reduction <add>, %116, %cst_87 [1] : vector<8x32xf32> to vector<8xf32>
    %118 = vector.shape_cast %117 : vector<8xf32> to vector<8x1xf32>
    %cst_88 = arith.constant 3.200000e+01 : f32
    %119 = vector.broadcast %cst_88 : f32 to vector<8x1xf32>
    %120 = arith.divf %118, %119 : vector<8x1xf32>
    %121 = vector.broadcast %113 : vector<8x1xf32> to vector<8x32xf32>
    %122 = arith.subf %105, %121 : vector<8x32xf32>
    %cst_89 = arith.constant 9.99999974E-6 : f32
    %123 = vector.broadcast %cst_89 : f32 to vector<8x1xf32>
    %124 = arith.addf %120, %123 : vector<8x1xf32>
    %125 = math.rsqrt %124 : vector<8x1xf32>
    %126 = vector.broadcast %125 : vector<8x1xf32> to vector<8x32xf32>
    %127 = arith.mulf %122, %126 : vector<8x32xf32>
    %128 = vector.broadcast %107 : vector<1x32xf32> to vector<8x32xf32>
    %129 = arith.mulf %127, %128 : vector<8x32xf32>
    %130 = vector.broadcast %109 : vector<1x32xf32> to vector<8x32xf32>
    %131 = arith.addf %129, %130 : vector<8x32xf32>
    %132 = arith.truncf %131 : vector<8x32xf32> to vector<8x32xbf16>
    %c0_90 = arith.constant 0 : index
    %c0_91 = arith.constant 0 : index
    %c0_92 = arith.constant 0 : index
    %133 = vector.load %arg11[%c0_90, %c0_91, %c0_92] : memref<2x32x64xbf16, #tpu.memory_space<vmem>>, vector<1x32x64xbf16>
    %134 = vector.shape_cast %133 : vector<1x32x64xbf16> to vector<32x64xbf16>
    %cst_93 = arith.constant dense<0.000000e+00> : vector<8x64xf32>
    %135 = tpu.matmul %132, %134, %cst_93 {dimension_numbers = #tpu.dot_dimension_numbers<[1], [0], [0], [1], [0, 0, 1, 1], [], []>} : vector<8x32xbf16>, vector<32x64xbf16>, vector<8x64xf32> -> vector<8x64xf32>
    %c0_94 = arith.constant 0 : index
    %c0_95 = arith.constant 0 : index
    %c0_96 = arith.constant 0 : index
    %136 = vector.load %arg12[%c0_94, %c0_95, %c0_96] : memref<2x1x64xf32, #tpu.memory_space<vmem>>, vector<1x1x64xf32>
    %137 = vector.shape_cast %136 : vector<1x1x64xf32> to vector<1x64xf32>
    %138 = vector.broadcast %137 : vector<1x64xf32> to vector<8x64xf32>
    %139 = arith.addf %135, %138 : vector<8x64xf32>
    %cst_97 = arith.constant 0.000000e+00 : f32
    %140 = vector.broadcast %cst_97 : f32 to vector<8x64xf32>
    %141 = arith.maximumf %139, %140 : vector<8x64xf32>
    %142 = arith.truncf %141 : vector<8x64xf32> to vector<8x64xbf16>
    %c0_98 = arith.constant 0 : index
    %c0_99 = arith.constant 0 : index
    %c0_100 = arith.constant 0 : index
    %143 = vector.load %arg13[%c0_98, %c0_99, %c0_100] : memref<2x64x32xbf16, #tpu.memory_space<vmem>>, vector<1x64x32xbf16>
    %144 = vector.shape_cast %143 : vector<1x64x32xbf16> to vector<64x32xbf16>
    %cst_101 = arith.constant dense<0.000000e+00> : vector<8x32xf32>
    %145 = tpu.matmul %142, %144, %cst_101 {dimension_numbers = #tpu.dot_dimension_numbers<[1], [0], [0], [1], [0, 0, 1, 1], [], []>} : vector<8x64xbf16>, vector<64x32xbf16>, vector<8x32xf32> -> vector<8x32xf32>
    %c0_102 = arith.constant 0 : index
    %c0_103 = arith.constant 0 : index
    %c0_104 = arith.constant 0 : index
    %146 = vector.load %arg14[%c0_102, %c0_103, %c0_104] : memref<2x1x32xf32, #tpu.memory_space<vmem>>, vector<1x1x32xf32>
    %147 = vector.shape_cast %146 : vector<1x1x32xf32> to vector<1x32xf32>
    %148 = vector.broadcast %147 : vector<1x32xf32> to vector<8x32xf32>
    %149 = arith.addf %145, %148 : vector<8x32xf32>
    %150 = arith.addf %131, %149 : vector<8x32xf32>
    %c0_105 = arith.constant 0 : index
    %c0_106 = arith.constant 0 : index
    %c0_107 = arith.constant 0 : index
    %151 = vector.load %arg17[%c0_105, %c0_106, %c0_107] : memref<2x1x32xf32, #tpu.memory_space<vmem>>, vector<1x1x32xf32>
    %152 = vector.shape_cast %151 : vector<1x1x32xf32> to vector<1x32xf32>
    %c0_108 = arith.constant 0 : index
    %c0_109 = arith.constant 0 : index
    %c0_110 = arith.constant 0 : index
    %153 = vector.load %arg18[%c0_108, %c0_109, %c0_110] : memref<2x1x32xf32, #tpu.memory_space<vmem>>, vector<1x1x32xf32>
    %154 = vector.shape_cast %153 : vector<1x1x32xf32> to vector<1x32xf32>
    %cst_111 = arith.constant dense<0.000000e+00> : vector<8xf32>
    %155 = vector.multi_reduction <add>, %150, %cst_111 [1] : vector<8x32xf32> to vector<8xf32>
    %156 = vector.shape_cast %155 : vector<8xf32> to vector<8x1xf32>
    %cst_112 = arith.constant 3.200000e+01 : f32
    %157 = vector.broadcast %cst_112 : f32 to vector<8x1xf32>
    %158 = arith.divf %156, %157 : vector<8x1xf32>
    %159 = vector.broadcast %158 : vector<8x1xf32> to vector<8x32xf32>
    %160 = arith.subf %150, %159 : vector<8x32xf32>
    %161 = arith.mulf %160, %160 : vector<8x32xf32>
    %cst_113 = arith.constant dense<0.000000e+00> : vector<8xf32>
    %162 = vector.multi_reduction <add>, %161, %cst_113 [1] : vector<8x32xf32> to vector<8xf32>
    %163 = vector.shape_cast %162 : vector<8xf32> to vector<8x1xf32>
    %cst_114 = arith.constant 3.200000e+01 : f32
    %164 = vector.broadcast %cst_114 : f32 to vector<8x1xf32>
    %165 = arith.divf %163, %164 : vector<8x1xf32>
    %166 = vector.broadcast %158 : vector<8x1xf32> to vector<8x32xf32>
    %167 = arith.subf %150, %166 : vector<8x32xf32>
    %cst_115 = arith.constant 9.99999974E-6 : f32
    %168 = vector.broadcast %cst_115 : f32 to vector<8x1xf32>
    %169 = arith.addf %165, %168 : vector<8x1xf32>
    %170 = math.rsqrt %169 : vector<8x1xf32>
    %171 = vector.broadcast %170 : vector<8x1xf32> to vector<8x32xf32>
    %172 = arith.mulf %167, %171 : vector<8x32xf32>
    %173 = vector.broadcast %152 : vector<1x32xf32> to vector<8x32xf32>
    %174 = arith.mulf %172, %173 : vector<8x32xf32>
    %175 = vector.broadcast %154 : vector<1x32xf32> to vector<8x32xf32>
    %176 = arith.addf %174, %175 : vector<8x32xf32>
    %177 = arith.truncf %176 : vector<8x32xf32> to vector<8x32xbf16>
    %cst_116 = arith.constant 0.000000e+00 : f32
    %178 = vector.broadcast %cst_116 : f32 to vector<8x32xf32>
    %c1_117 = arith.constant 1 : index
    %c0_118 = arith.constant 0 : index
    %c0_119 = arith.constant 0 : index
    %c0_120 = arith.constant 0 : index
    %179 = vector.load %arg3[%c1_117, %c0_118, %c0_119, %c0_120] : memref<2x2x32x16xbf16, #tpu.memory_space<vmem>>, vector<1x1x32x16xbf16>
    %180 = vector.shape_cast %179 : vector<1x1x32x16xbf16> to vector<32x16xbf16>
    %cst_121 = arith.constant dense<0.000000e+00> : vector<8x16xf32>
    %181 = tpu.matmul %177, %180, %cst_121 {dimension_numbers = #tpu.dot_dimension_numbers<[1], [0], [0], [1], [0, 0, 1, 1], [], []>} : vector<8x32xbf16>, vector<32x16xbf16>, vector<8x16xf32> -> vector<8x16xf32>
    %c1_122 = arith.constant 1 : index
    %c0_123 = arith.constant 0 : index
    %c0_124 = arith.constant 0 : index
    %c0_125 = arith.constant 0 : index
    %182 = vector.load %arg4[%c1_122, %c0_123, %c0_124, %c0_125] : memref<2x2x1x16xf32, #tpu.memory_space<vmem>>, vector<1x1x1x16xf32>
    %183 = vector.shape_cast %182 : vector<1x1x1x16xf32> to vector<1x16xf32>
    %184 = vector.broadcast %183 : vector<1x16xf32> to vector<8x16xf32>
    %185 = arith.addf %181, %184 : vector<8x16xf32>
    %186 = vector.shape_cast %185 : vector<8x16xf32> to vector<1x8x16xf32>
    %c1_126 = arith.constant 1 : index
    %c0_127 = arith.constant 0 : index
    %c0_128 = arith.constant 0 : index
    %c0_129 = arith.constant 0 : index
    %187 = vector.load %arg5[%c1_126, %c0_127, %c0_128, %c0_129] : memref<2x2x32x16xbf16, #tpu.memory_space<vmem>>, vector<1x1x32x16xbf16>
    %188 = vector.shape_cast %187 : vector<1x1x32x16xbf16> to vector<32x16xbf16>
    %cst_130 = arith.constant dense<0.000000e+00> : vector<8x16xf32>
    %189 = tpu.matmul %177, %188, %cst_130 {dimension_numbers = #tpu.dot_dimension_numbers<[1], [0], [0], [1], [0, 0, 1, 1], [], []>} : vector<8x32xbf16>, vector<32x16xbf16>, vector<8x16xf32> -> vector<8x16xf32>
    %c1_131 = arith.constant 1 : index
    %c0_132 = arith.constant 0 : index
    %c0_133 = arith.constant 0 : index
    %c0_134 = arith.constant 0 : index
    %190 = vector.load %arg6[%c1_131, %c0_132, %c0_133, %c0_134] : memref<2x2x1x16xf32, #tpu.memory_space<vmem>>, vector<1x1x1x16xf32>
    %191 = vector.shape_cast %190 : vector<1x1x1x16xf32> to vector<1x16xf32>
    %192 = vector.broadcast %191 : vector<1x16xf32> to vector<8x16xf32>
    %193 = arith.addf %189, %192 : vector<8x16xf32>
    %194 = vector.shape_cast %193 : vector<8x16xf32> to vector<1x8x16xf32>
    %c1_135 = arith.constant 1 : index
    %c0_136 = arith.constant 0 : index
    %c0_137 = arith.constant 0 : index
    %c0_138 = arith.constant 0 : index
    %195 = vector.load %arg7[%c1_135, %c0_136, %c0_137, %c0_138] : memref<2x2x32x16xbf16, #tpu.memory_space<vmem>>, vector<1x1x32x16xbf16>
    %196 = vector.shape_cast %195 : vector<1x1x32x16xbf16> to vector<32x16xbf16>
    %cst_139 = arith.constant dense<0.000000e+00> : vector<8x16xf32>
    %197 = tpu.matmul %177, %196, %cst_139 {dimension_numbers = #tpu.dot_dimension_numbers<[1], [0], [0], [1], [0, 0, 1, 1], [], []>} : vector<8x32xbf16>, vector<32x16xbf16>, vector<8x16xf32> -> vector<8x16xf32>
    %c1_140 = arith.constant 1 : index
    %c0_141 = arith.constant 0 : index
    %c0_142 = arith.constant 0 : index
    %c0_143 = arith.constant 0 : index
    %198 = vector.load %arg8[%c1_140, %c0_141, %c0_142, %c0_143] : memref<2x2x1x16xf32, #tpu.memory_space<vmem>>, vector<1x1x1x16xf32>
    %199 = vector.shape_cast %198 : vector<1x1x1x16xf32> to vector<1x16xf32>
    %200 = vector.broadcast %199 : vector<1x16xf32> to vector<8x16xf32>
    %201 = arith.addf %197, %200 : vector<8x16xf32>
    %202 = vector.shape_cast %201 : vector<8x16xf32> to vector<1x8x16xf32>
    %203 = arith.truncf %186 : vector<1x8x16xf32> to vector<1x8x16xbf16>
    %204 = arith.truncf %194 : vector<1x8x16xf32> to vector<1x8x16xbf16>
    "tpu.trace_start"() <{level = 10 : i32, message = "bsk,btk->bst"}> : () -> ()
    %cst_144 = arith.constant dense<0.000000e+00> : vector<1x8x8xf32>
    %205 = tpu.matmul %203, %204, %cst_144 {dimension_numbers = #tpu.dot_dimension_numbers<[2], [2], [1], [1], [0, 0, 0, 1, 1, 1], [0], [0]>} : vector<1x8x16xbf16>, vector<1x8x16xbf16>, vector<1x8x8xf32> -> vector<1x8x8xf32>
    "tpu.trace_stop"() : () -> ()
    %cst_145 = arith.constant dense<0xFF800000> : vector<1x8xf32>
    %206 = vector.multi_reduction <maximumf>, %205, %cst_145 [2] : vector<1x8x8xf32> to vector<1x8xf32>
    %207 = vector.shape_cast %206 : vector<1x8xf32> to vector<1x8x1xf32>
    %208 = vector.broadcast %207 : vector<1x8x1xf32> to vector<1x8x8xf32>
    %209 = arith.subf %205, %208 : vector<1x8x8xf32>
    %210 = math.exp %209 : vector<1x8x8xf32>
    %cst_146 = arith.constant dense<0.000000e+00> : vector<1x8xf32>
    %211 = vector.multi_reduction <add>, %210, %cst_146 [2] : vector<1x8x8xf32> to vector<1x8xf32>
    %212 = vector.shape_cast %211 : vector<1x8xf32> to vector<1x8x1xf32>
    %213 = tpu.reciprocal %212 {approx = true} : vector<1x8x1xf32> -> vector<1x8x1xf32>
    %214 = vector.broadcast %213 : vector<1x8x1xf32> to vector<1x8x8xf32>
    %215 = arith.mulf %210, %214 : vector<1x8x8xf32>
    %216 = arith.truncf %215 : vector<1x8x8xf32> to vector<1x8x8xbf16>
    %217 = arith.truncf %202 : vector<1x8x16xf32> to vector<1x8x16xbf16>
    "tpu.trace_start"() <{level = 10 : i32, message = "bst,btk->bsk"}> : () -> ()
    %cst_147 = arith.constant dense<0.000000e+00> : vector<1x8x16xf32>
    %218 = tpu.matmul %216, %217, %cst_147 {dimension_numbers = #tpu.dot_dimension_numbers<[2], [1], [1], [2], [0, 0, 0, 1, 1, 2], [0], [0]>} : vector<1x8x8xbf16>, vector<1x8x16xbf16>, vector<1x8x16xf32> -> vector<1x8x16xf32>
    "tpu.trace_stop"() : () -> ()
    %219 = vector.shape_cast %218 : vector<1x8x16xf32> to vector<8x16xf32>
    %220 = arith.truncf %219 : vector<8x16xf32> to vector<8x16xbf16>
    %c1_148 = arith.constant 1 : index
    %c0_149 = arith.constant 0 : index
    %c0_150 = arith.constant 0 : index
    %c0_151 = arith.constant 0 : index
    %221 = vector.load %arg9[%c1_148, %c0_149, %c0_150, %c0_151] : memref<2x2x16x32xbf16, #tpu.memory_space<vmem>>, vector<1x1x16x32xbf16>
    %222 = vector.shape_cast %221 : vector<1x1x16x32xbf16> to vector<16x32xbf16>
    %cst_152 = arith.constant dense<0.000000e+00> : vector<8x32xf32>
    %223 = tpu.matmul %220, %222, %cst_152 {dimension_numbers = #tpu.dot_dimension_numbers<[1], [0], [0], [1], [0, 0, 1, 1], [], []>} : vector<8x16xbf16>, vector<16x32xbf16>, vector<8x32xf32> -> vector<8x32xf32>
    %224 = arith.addf %178, %223 : vector<8x32xf32>
    %c1_153 = arith.constant 1 : index
    %c1_154 = arith.constant 1 : index
    %c0_155 = arith.constant 0 : index
    %c0_156 = arith.constant 0 : index
    %225 = vector.load %arg3[%c1_153, %c1_154, %c0_155, %c0_156] : memref<2x2x32x16xbf16, #tpu.memory_space<vmem>>, vector<1x1x32x16xbf16>
    %226 = vector.shape_cast %225 : vector<1x1x32x16xbf16> to vector<32x16xbf16>
    %cst_157 = arith.constant dense<0.000000e+00> : vector<8x16xf32>
    %227 = tpu.matmul %177, %226, %cst_157 {dimension_numbers = #tpu.dot_dimension_numbers<[1], [0], [0], [1], [0, 0, 1, 1], [], []>} : vector<8x32xbf16>, vector<32x16xbf16>, vector<8x16xf32> -> vector<8x16xf32>
    %c1_158 = arith.constant 1 : index
    %c1_159 = arith.constant 1 : index
    %c0_160 = arith.constant 0 : index
    %c0_161 = arith.constant 0 : index
    %228 = vector.load %arg4[%c1_158, %c1_159, %c0_160, %c0_161] : memref<2x2x1x16xf32, #tpu.memory_space<vmem>>, vector<1x1x1x16xf32>
    %229 = vector.shape_cast %228 : vector<1x1x1x16xf32> to vector<1x16xf32>
    %230 = vector.broadcast %229 : vector<1x16xf32> to vector<8x16xf32>
    %231 = arith.addf %227, %230 : vector<8x16xf32>
    %232 = vector.shape_cast %231 : vector<8x16xf32> to vector<1x8x16xf32>
    %c1_162 = arith.constant 1 : index
    %c1_163 = arith.constant 1 : index
    %c0_164 = arith.constant 0 : index
    %c0_165 = arith.constant 0 : index
    %233 = vector.load %arg5[%c1_162, %c1_163, %c0_164, %c0_165] : memref<2x2x32x16xbf16, #tpu.memory_space<vmem>>, vector<1x1x32x16xbf16>
    %234 = vector.shape_cast %233 : vector<1x1x32x16xbf16> to vector<32x16xbf16>
    %cst_166 = arith.constant dense<0.000000e+00> : vector<8x16xf32>
    %235 = tpu.matmul %177, %234, %cst_166 {dimension_numbers = #tpu.dot_dimension_numbers<[1], [0], [0], [1], [0, 0, 1, 1], [], []>} : vector<8x32xbf16>, vector<32x16xbf16>, vector<8x16xf32> -> vector<8x16xf32>
    %c1_167 = arith.constant 1 : index
    %c1_168 = arith.constant 1 : index
    %c0_169 = arith.constant 0 : index
    %c0_170 = arith.constant 0 : index
    %236 = vector.load %arg6[%c1_167, %c1_168, %c0_169, %c0_170] : memref<2x2x1x16xf32, #tpu.memory_space<vmem>>, vector<1x1x1x16xf32>
    %237 = vector.shape_cast %236 : vector<1x1x1x16xf32> to vector<1x16xf32>
    %238 = vector.broadcast %237 : vector<1x16xf32> to vector<8x16xf32>
    %239 = arith.addf %235, %238 : vector<8x16xf32>
    %240 = vector.shape_cast %239 : vector<8x16xf32> to vector<1x8x16xf32>
    %c1_171 = arith.constant 1 : index
    %c1_172 = arith.constant 1 : index
    %c0_173 = arith.constant 0 : index
    %c0_174 = arith.constant 0 : index
    %241 = vector.load %arg7[%c1_171, %c1_172, %c0_173, %c0_174] : memref<2x2x32x16xbf16, #tpu.memory_space<vmem>>, vector<1x1x32x16xbf16>
    %242 = vector.shape_cast %241 : vector<1x1x32x16xbf16> to vector<32x16xbf16>
    %cst_175 = arith.constant dense<0.000000e+00> : vector<8x16xf32>
    %243 = tpu.matmul %177, %242, %cst_175 {dimension_numbers = #tpu.dot_dimension_numbers<[1], [0], [0], [1], [0, 0, 1, 1], [], []>} : vector<8x32xbf16>, vector<32x16xbf16>, vector<8x16xf32> -> vector<8x16xf32>
    %c1_176 = arith.constant 1 : index
    %c1_177 = arith.constant 1 : index
    %c0_178 = arith.constant 0 : index
    %c0_179 = arith.constant 0 : index
    %244 = vector.load %arg8[%c1_176, %c1_177, %c0_178, %c0_179] : memref<2x2x1x16xf32, #tpu.memory_space<vmem>>, vector<1x1x1x16xf32>
    %245 = vector.shape_cast %244 : vector<1x1x1x16xf32> to vector<1x16xf32>
    %246 = vector.broadcast %245 : vector<1x16xf32> to vector<8x16xf32>
    %247 = arith.addf %243, %246 : vector<8x16xf32>
    %248 = vector.shape_cast %247 : vector<8x16xf32> to vector<1x8x16xf32>
    %249 = arith.truncf %232 : vector<1x8x16xf32> to vector<1x8x16xbf16>
    %250 = arith.truncf %240 : vector<1x8x16xf32> to vector<1x8x16xbf16>
    "tpu.trace_start"() <{level = 10 : i32, message = "bsk,btk->bst"}> : () -> ()
    %cst_180 = arith.constant dense<0.000000e+00> : vector<1x8x8xf32>
    %251 = tpu.matmul %249, %250, %cst_180 {dimension_numbers = #tpu.dot_dimension_numbers<[2], [2], [1], [1], [0, 0, 0, 1, 1, 1], [0], [0]>} : vector<1x8x16xbf16>, vector<1x8x16xbf16>, vector<1x8x8xf32> -> vector<1x8x8xf32>
    "tpu.trace_stop"() : () -> ()
    %cst_181 = arith.constant dense<0xFF800000> : vector<1x8xf32>
    %252 = vector.multi_reduction <maximumf>, %251, %cst_181 [2] : vector<1x8x8xf32> to vector<1x8xf32>
    %253 = vector.shape_cast %252 : vector<1x8xf32> to vector<1x8x1xf32>
    %254 = vector.broadcast %253 : vector<1x8x1xf32> to vector<1x8x8xf32>
    %255 = arith.subf %251, %254 : vector<1x8x8xf32>
    %256 = math.exp %255 : vector<1x8x8xf32>
    %cst_182 = arith.constant dense<0.000000e+00> : vector<1x8xf32>
    %257 = vector.multi_reduction <add>, %256, %cst_182 [2] : vector<1x8x8xf32> to vector<1x8xf32>
    %258 = vector.shape_cast %257 : vector<1x8xf32> to vector<1x8x1xf32>
    %259 = tpu.reciprocal %258 {approx = true} : vector<1x8x1xf32> -> vector<1x8x1xf32>
    %260 = vector.broadcast %259 : vector<1x8x1xf32> to vector<1x8x8xf32>
    %261 = arith.mulf %256, %260 : vector<1x8x8xf32>
    %262 = arith.truncf %261 : vector<1x8x8xf32> to vector<1x8x8xbf16>
    %263 = arith.truncf %248 : vector<1x8x16xf32> to vector<1x8x16xbf16>
    "tpu.trace_start"() <{level = 10 : i32, message = "bst,btk->bsk"}> : () -> ()
    %cst_183 = arith.constant dense<0.000000e+00> : vector<1x8x16xf32>
    %264 = tpu.matmul %262, %263, %cst_183 {dimension_numbers = #tpu.dot_dimension_numbers<[2], [1], [1], [2], [0, 0, 0, 1, 1, 2], [0], [0]>} : vector<1x8x8xbf16>, vector<1x8x16xbf16>, vector<1x8x16xf32> -> vector<1x8x16xf32>
    "tpu.trace_stop"() : () -> ()
    %265 = vector.shape_cast %264 : vector<1x8x16xf32> to vector<8x16xf32>
    %266 = arith.truncf %265 : vector<8x16xf32> to vector<8x16xbf16>
    %c1_184 = arith.constant 1 : index
    %c1_185 = arith.constant 1 : index
    %c0_186 = arith.constant 0 : index
    %c0_187 = arith.constant 0 : index
    %267 = vector.load %arg9[%c1_184, %c1_185, %c0_186, %c0_187] : memref<2x2x16x32xbf16, #tpu.memory_space<vmem>>, vector<1x1x16x32xbf16>
    %268 = vector.shape_cast %267 : vector<1x1x16x32xbf16> to vector<16x32xbf16>
    %cst_188 = arith.constant dense<0.000000e+00> : vector<8x32xf32>
    %269 = tpu.matmul %266, %268, %cst_188 {dimension_numbers = #tpu.dot_dimension_numbers<[1], [0], [0], [1], [0, 0, 1, 1], [], []>} : vector<8x16xbf16>, vector<16x32xbf16>, vector<8x32xf32> -> vector<8x32xf32>
    %270 = arith.addf %224, %269 : vector<8x32xf32>
    %c1_189 = arith.constant 1 : index
    %c0_190 = arith.constant 0 : index
    %c0_191 = arith.constant 0 : index
    %271 = vector.load %arg10[%c1_189, %c0_190, %c0_191] : memref<2x1x32xf32, #tpu.memory_space<vmem>>, vector<1x1x32xf32>
    %272 = vector.shape_cast %271 : vector<1x1x32xf32> to vector<1x32xf32>
    %273 = vector.broadcast %272 : vector<1x32xf32> to vector<8x32xf32>
    %274 = arith.addf %270, %273 : vector<8x32xf32>
    %275 = arith.addf %176, %274 : vector<8x32xf32>
    %c1_192 = arith.constant 1 : index
    %c0_193 = arith.constant 0 : index
    %c0_194 = arith.constant 0 : index
    %276 = vector.load %arg15[%c1_192, %c0_193, %c0_194] : memref<2x1x32xf32, #tpu.memory_space<vmem>>, vector<1x1x32xf32>
    %277 = vector.shape_cast %276 : vector<1x1x32xf32> to vector<1x32xf32>
    %c1_195 = arith.constant 1 : index
    %c0_196 = arith.constant 0 : index
    %c0_197 = arith.constant 0 : index
    %278 = vector.load %arg16[%c1_195, %c0_196, %c0_197] : memref<2x1x32xf32, #tpu.memory_space<vmem>>, vector<1x1x32xf32>
    %279 = vector.shape_cast %278 : vector<1x1x32xf32> to vector<1x32xf32>
    %cst_198 = arith.constant dense<0.000000e+00> : vector<8xf32>
    %280 = vector.multi_reduction <add>, %275, %cst_198 [1] : vector<8x32xf32> to vector<8xf32>
    %281 = vector.shape_cast %280 : vector<8xf32> to vector<8x1xf32>
    %cst_199 = arith.constant 3.200000e+01 : f32
    %282 = vector.broadcast %cst_199 : f32 to vector<8x1xf32>
    %283 = arith.divf %281, %282 : vector<8x1xf32>
    %284 = vector.broadcast %283 : vector<8x1xf32> to vector<8x32xf32>
    %285 = arith.subf %275, %284 : vector<8x32xf32>
    %286 = arith.mulf %285, %285 : vector<8x32xf32>
    %cst_200 = arith.constant dense<0.000000e+00> : vector<8xf32>
    %287 = vector.multi_reduction <add>, %286, %cst_200 [1] : vector<8x32xf32> to vector<8xf32>
    %288 = vector.shape_cast %287 : vector<8xf32> to vector<8x1xf32>
    %cst_201 = arith.constant 3.200000e+01 : f32
    %289 = vector.broadcast %cst_201 : f32 to vector<8x1xf32>
    %290 = arith.divf %288, %289 : vector<8x1xf32>
    %291 = vector.broadcast %283 : vector<8x1xf32> to vector<8x32xf32>
    %292 = arith.subf %275, %291 : vector<8x32xf32>
    %cst_202 = arith.constant 9.99999974E-6 : f32
    %293 = vector.broadcast %cst_202 : f32 to vector<8x1xf32>
    %294 = arith.addf %290, %293 : vector<8x1xf32>
    %295 = math.rsqrt %294 : vector<8x1xf32>
    %296 = vector.broadcast %295 : vector<8x1xf32> to vector<8x32xf32>
    %297 = arith.mulf %292, %296 : vector<8x32xf32>
    %298 = vector.broadcast %277 : vector<1x32xf32> to vector<8x32xf32>
    %299 = arith.mulf %297, %298 : vector<8x32xf32>
    %300 = vector.broadcast %279 : vector<1x32xf32> to vector<8x32xf32>
    %301 = arith.addf %299, %300 : vector<8x32xf32>
    %302 = arith.truncf %301 : vector<8x32xf32> to vector<8x32xbf16>
    %c1_203 = arith.constant 1 : index
    %c0_204 = arith.constant 0 : index
    %c0_205 = arith.constant 0 : index
    %303 = vector.load %arg11[%c1_203, %c0_204, %c0_205] : memref<2x32x64xbf16, #tpu.memory_space<vmem>>, vector<1x32x64xbf16>
    %304 = vector.shape_cast %303 : vector<1x32x64xbf16> to vector<32x64xbf16>
    %cst_206 = arith.constant dense<0.000000e+00> : vector<8x64xf32>
    %305 = tpu.matmul %302, %304, %cst_206 {dimension_numbers = #tpu.dot_dimension_numbers<[1], [0], [0], [1], [0, 0, 1, 1], [], []>} : vector<8x32xbf16>, vector<32x64xbf16>, vector<8x64xf32> -> vector<8x64xf32>
    %c1_207 = arith.constant 1 : index
    %c0_208 = arith.constant 0 : index
    %c0_209 = arith.constant 0 : index
    %306 = vector.load %arg12[%c1_207, %c0_208, %c0_209] : memref<2x1x64xf32, #tpu.memory_space<vmem>>, vector<1x1x64xf32>
    %307 = vector.shape_cast %306 : vector<1x1x64xf32> to vector<1x64xf32>
    %308 = vector.broadcast %307 : vector<1x64xf32> to vector<8x64xf32>
    %309 = arith.addf %305, %308 : vector<8x64xf32>
    %cst_210 = arith.constant 0.000000e+00 : f32
    %310 = vector.broadcast %cst_210 : f32 to vector<8x64xf32>
    %311 = arith.maximumf %309, %310 : vector<8x64xf32>
    %312 = arith.truncf %311 : vector<8x64xf32> to vector<8x64xbf16>
    %c1_211 = arith.constant 1 : index
    %c0_212 = arith.constant 0 : index
    %c0_213 = arith.constant 0 : index
    %313 = vector.load %arg13[%c1_211, %c0_212, %c0_213] : memref<2x64x32xbf16, #tpu.memory_space<vmem>>, vector<1x64x32xbf16>
    %314 = vector.shape_cast %313 : vector<1x64x32xbf16> to vector<64x32xbf16>
    %cst_214 = arith.constant dense<0.000000e+00> : vector<8x32xf32>
    %315 = tpu.matmul %312, %314, %cst_214 {dimension_numbers = #tpu.dot_dimension_numbers<[1], [0], [0], [1], [0, 0, 1, 1], [], []>} : vector<8x64xbf16>, vector<64x32xbf16>, vector<8x32xf32> -> vector<8x32xf32>
    %c1_215 = arith.constant 1 : index
    %c0_216 = arith.constant 0 : index
    %c0_217 = arith.constant 0 : index
    %316 = vector.load %arg14[%c1_215, %c0_216, %c0_217] : memref<2x1x32xf32, #tpu.memory_space<vmem>>, vector<1x1x32xf32>
    %317 = vector.shape_cast %316 : vector<1x1x32xf32> to vector<1x32xf32>
    %318 = vector.broadcast %317 : vector<1x32xf32> to vector<8x32xf32>
    %319 = arith.addf %315, %318 : vector<8x32xf32>
    %320 = arith.addf %301, %319 : vector<8x32xf32>
    %c1_218 = arith.constant 1 : index
    %c0_219 = arith.constant 0 : index
    %c0_220 = arith.constant 0 : index
    %321 = vector.load %arg17[%c1_218, %c0_219, %c0_220] : memref<2x1x32xf32, #tpu.memory_space<vmem>>, vector<1x1x32xf32>
    %322 = vector.shape_cast %321 : vector<1x1x32xf32> to vector<1x32xf32>
    %c1_221 = arith.constant 1 : index
    %c0_222 = arith.constant 0 : index
    %c0_223 = arith.constant 0 : index
    %323 = vector.load %arg18[%c1_221, %c0_222, %c0_223] : memref<2x1x32xf32, #tpu.memory_space<vmem>>, vector<1x1x32xf32>
    %324 = vector.shape_cast %323 : vector<1x1x32xf32> to vector<1x32xf32>
    %cst_224 = arith.constant dense<0.000000e+00> : vector<8xf32>
    %325 = vector.multi_reduction <add>, %320, %cst_224 [1] : vector<8x32xf32> to vector<8xf32>
    %326 = vector.shape_cast %325 : vector<8xf32> to vector<8x1xf32>
    %cst_225 = arith.constant 3.200000e+01 : f32
    %327 = vector.broadcast %cst_225 : f32 to vector<8x1xf32>
    %328 = arith.divf %326, %327 : vector<8x1xf32>
    %329 = vector.broadcast %328 : vector<8x1xf32> to vector<8x32xf32>
    %330 = arith.subf %320, %329 : vector<8x32xf32>
    %331 = arith.mulf %330, %330 : vector<8x32xf32>
    %cst_226 = arith.constant dense<0.000000e+00> : vector<8xf32>
    %332 = vector.multi_reduction <add>, %331, %cst_226 [1] : vector<8x32xf32> to vector<8xf32>
    %333 = vector.shape_cast %332 : vector<8xf32> to vector<8x1xf32>
    %cst_227 = arith.constant 3.200000e+01 : f32
    %334 = vector.broadcast %cst_227 : f32 to vector<8x1xf32>
    %335 = arith.divf %333, %334 : vector<8x1xf32>
    %336 = vector.broadcast %328 : vector<8x1xf32> to vector<8x32xf32>
    %337 = arith.subf %320, %336 : vector<8x32xf32>
    %cst_228 = arith.constant 9.99999974E-6 : f32
    %338 = vector.broadcast %cst_228 : f32 to vector<8x1xf32>
    %339 = arith.addf %335, %338 : vector<8x1xf32>
    %340 = math.rsqrt %339 : vector<8x1xf32>
    %341 = vector.broadcast %340 : vector<8x1xf32> to vector<8x32xf32>
    %342 = arith.mulf %337, %341 : vector<8x32xf32>
    %343 = vector.broadcast %322 : vector<1x32xf32> to vector<8x32xf32>
    %344 = arith.mulf %342, %343 : vector<8x32xf32>
    %345 = vector.broadcast %324 : vector<1x32xf32> to vector<8x32xf32>
    %346 = arith.addf %344, %345 : vector<8x32xf32>
    %347 = arith.truncf %346 : vector<8x32xf32> to vector<8x32xbf16>
    %c0_229 = arith.constant 0 : index
    %c0_230 = arith.constant 0 : index
    %348 = vector.load %arg19[%c0_229, %c0_230] : memref<32x128xbf16, #tpu.memory_space<vmem>>, vector<32x128xbf16>
    %cst_231 = arith.constant dense<0.000000e+00> : vector<8x128xf32>
    %349 = tpu.matmul %347, %348, %cst_231 {dimension_numbers = #tpu.dot_dimension_numbers<[1], [0], [0], [1], [0, 0, 1, 1], [], []>} : vector<8x32xbf16>, vector<32x128xbf16>, vector<8x128xf32> -> vector<8x128xf32>
    %c0_232 = arith.constant 0 : index
    %c0_233 = arith.constant 0 : index
    %350 = vector.load %arg20[%c0_232, %c0_233] : memref<1x128xf32, #tpu.memory_space<vmem>>, vector<1x128xf32>
    %351 = vector.broadcast %350 : vector<1x128xf32> to vector<8x128xf32>
    %352 = arith.addf %349, %351 : vector<8x128xf32>
    %353 = vector.shape_cast %352 : vector<8x128xf32> to vector<1x8x128xf32>
    %c0_234 = arith.constant 0 : index
    %c0_235 = arith.constant 0 : index
    %c0_236 = arith.constant 0 : index
    %354 = vector.load %arg21[%c0_234, %c0_235, %c0_236] : memref<1x8x128xf32, #tpu.memory_space<vmem>>, vector<1x8x128xf32>
    tpu.vector_store %arg21[%c0_234, %c0_235, %c0_236], %353 {strides = array<i32>} : memref<1x8x128xf32, #tpu.memory_space<vmem>>, vector<1x8x128xf32>,
    return
  }
  func.func @transform_0(%arg0: i32) -> (i32, i32, i32) {
    %c0_i32 = arith.constant 0 : i32
    %c0_i32_0 = arith.constant 0 : i32
    %c0_i32_1 = arith.constant 0 : i32
    return %arg0, %c0_i32, %c0_i32_0 : i32, i32, i32
  }
  func.func @transform_1(%arg0: i32) -> (i32, i32) {
    %c0_i32 = arith.constant 0 : i32
    %c0_i32_0 = arith.constant 0 : i32
    %c0_i32_1 = arith.constant 0 : i32
    return %c0_i32, %c0_i32_0 : i32, i32
  }
  func.func @transform_2(%arg0: i32) -> (i32, i32, i32, i32) {
    %c0_i32 = arith.constant 0 : i32
    %c0_i32_0 = arith.constant 0 : i32
    %c0_i32_1 = arith.constant 0 : i32
    %c0_i32_2 = arith.constant 0 : i32
    %c0_i32_3 = arith.constant 0 : i32
    return %c0_i32, %c0_i32_0, %c0_i32_1, %c0_i32_2 : i32, i32, i32, i32
  }
  func.func @transform_3(%arg0: i32) -> (i32, i32, i32, i32) {
    %c0_i32 = arith.constant 0 : i32
    %c0_i32_0 = arith.constant 0 : i32
    %c0_i32_1 = arith.constant 0 : i32
    %c0_i32_2 = arith.constant 0 : i32
    %c0_i32_3 = arith.constant 0 : i32
    return %c0_i32, %c0_i32_0, %c0_i32_1, %c0_i32_2 : i32, i32, i32, i32
  }
  func.func @transform_4(%arg0: i32) -> (i32, i32, i32, i32) {
    %c0_i32 = arith.constant 0 : i32
    %c0_i32_0 = arith.constant 0 : i32
    %c0_i32_1 = arith.constant 0 : i32
    %c0_i32_2 = arith.constant 0 : i32
    %c0_i32_3 = arith.constant 0 : i32
    return %c0_i32, %c0_i32_0, %c0_i32_1, %c0_i32_2 : i32, i32, i32, i32
  }
  func.func @transform_5(%arg0: i32) -> (i32, i32, i32, i32) {
    %c0_i32 = arith.constant 0 : i32
    %c0_i32_0 = arith.constant 0 : i32
    %c0_i32_1 = arith.constant 0 : i32
    %c0_i32_2 = arith.constant 0 : i32
    %c0_i32_3 = arith.constant 0 : i32
    return %c0_i32, %c0_i32_0, %c0_i32_1, %c0_i32_2 : i32, i32, i32, i32
  }
  func.func @transform_6(%arg0: i32) -> (i32, i32, i32, i32) {
    %c0_i32 = arith.constant 0 : i32
    %c0_i32_0 = arith.constant 0 : i32
    %c0_i32_1 = arith.constant 0 : i32
    %c0_i32_2 = arith.constant 0 : i32
    %c0_i32_3 = arith.constant 0 : i32
    return %c0_i32, %c0_i32_0, %c0_i32_1, %c0_i32_2 : i32, i32, i32, i32
  }
  func.func @transform_7(%arg0: i32) -> (i32, i32, i32, i32) {
    %c0_i32 = arith.constant 0 : i32
    %c0_i32_0 = arith.constant 0 : i32
    %c0_i32_1 = arith.constant 0 : i32
    %c0_i32_2 = arith.constant 0 : i32
    %c0_i32_3 = arith.constant 0 : i32
    return %c0_i32, %c0_i32_0, %c0_i32_1, %c0_i32_2 : i32, i32, i32, i32
  }
  func.func @transform_8(%arg0: i32) -> (i32, i32, i32, i32) {
    %c0_i32 = arith.constant 0 : i32
    %c0_i32_0 = arith.constant 0 : i32
    %c0_i32_1 = arith.constant 0 : i32
    %c0_i32_2 = arith.constant 0 : i32
    %c0_i32_3 = arith.constant 0 : i32
    return %c0_i32, %c0_i32_0, %c0_i32_1, %c0_i32_2 : i32, i32, i32, i32
  }
  func.func @transform_9(%arg0: i32) -> (i32, i32, i32) {
    %c0_i32 = arith.constant 0 : i32
    %c0_i32_0 = arith.constant 0 : i32
    %c0_i32_1 = arith.constant 0 : i32
    %c0_i32_2 = arith.constant 0 : i32
    return %c0_i32, %c0_i32_0, %c0_i32_1 : i32, i32, i32
  }
  func.func @transform_10(%arg0: i32) -> (i32, i32, i32) {
    %c0_i32 = arith.constant 0 : i32
    %c0_i32_0 = arith.constant 0 : i32
    %c0_i32_1 = arith.constant 0 : i32
    %c0_i32_2 = arith.constant 0 : i32
    return %c0_i32, %c0_i32_0, %c0_i32_1 : i32, i32, i32
  }
  func.func @transform_11(%arg0: i32) -> (i32, i32, i32) {
    %c0_i32 = arith.constant 0 : i32
    %c0_i32_0 = arith.constant 0 : i32
    %c0_i32_1 = arith.constant 0 : i32
    %c0_i32_2 = arith.constant 0 : i32
    return %c0_i32, %c0_i32_0, %c0_i32_1 : i32, i32, i32
  }
  func.func @transform_12(%arg0: i32) -> (i32, i32, i32) {
    %c0_i32 = arith.constant 0 : i32
    %c0_i32_0 = arith.constant 0 : i32
    %c0_i32_1 = arith.constant 0 : i32
    %c0_i32_2 = arith.constant 0 : i32
    return %c0_i32, %c0_i32_0, %c0_i32_1 : i32, i32, i32
  }
  func.func @transform_13(%arg0: i32) -> (i32, i32, i32) {
    %c0_i32 = arith.constant 0 : i32
    %c0_i32_0 = arith.constant 0 : i32
    %c0_i32_1 = arith.constant 0 : i32
    %c0_i32_2 = arith.constant 0 : i32
    return %c0_i32, %c0_i32_0, %c0_i32_1 : i32, i32, i32
  }
  func.func @transform_14(%arg0: i32) -> (i32, i32, i32) {
    %c0_i32 = arith.constant 0 : i32
    %c0_i32_0 = arith.constant 0 : i32
    %c0_i32_1 = arith.constant 0 : i32
    %c0_i32_2 = arith.constant 0 : i32
    return %c0_i32, %c0_i32_0, %c0_i32_1 : i32, i32, i32
  }
  func.func @transform_15(%arg0: i32) -> (i32, i32, i32) {
    %c0_i32 = arith.constant 0 : i32
    %c0_i32_0 = arith.constant 0 : i32
    %c0_i32_1 = arith.constant 0 : i32
    %c0_i32_2 = arith.constant 0 : i32
    return %c0_i32, %c0_i32_0, %c0_i32_1 : i32, i32, i32
  }
  func.func @transform_16(%arg0: i32) -> (i32, i32, i32) {
    %c0_i32 = arith.constant 0 : i32
    %c0_i32_0 = arith.constant 0 : i32
    %c0_i32_1 = arith.constant 0 : i32
    %c0_i32_2 = arith.constant 0 : i32
    return %c0_i32, %c0_i32_0, %c0_i32_1 : i32, i32, i32
  }
  func.func @transform_17(%arg0: i32) -> (i32, i32, i32) {
    %c0_i32 = arith.constant 0 : i32
    %c0_i32_0 = arith.constant 0 : i32
    %c0_i32_1 = arith.constant 0 : i32
    %c0_i32_2 = arith.constant 0 : i32
    return %c0_i32, %c0_i32_0, %c0_i32_1 : i32, i32, i32
  }
  func.func @transform_18(%arg0: i32) -> (i32, i32) {
    %c0_i32 = arith.constant 0 : i32
    %c0_i32_0 = arith.constant 0 : i32
    %c0_i32_1 = arith.constant 0 : i32
    return %c0_i32, %c0_i32_0 : i32, i32
  }
  func.func @transform_19(%arg0: i32) -> (i32, i32) {
    %c0_i32 = arith.constant 0 : i32
    %c0_i32_0 = arith.constant 0 : i32
    %c0_i32_1 = arith.constant 0 : i32
    return %c0_i32, %c0_i32_0 : i32, i32
  }
  func.func @transform_20(%arg0: i32) -> (i32, i32, i32) {
    %c0_i32 = arith.constant 0 : i32
    %c0_i32_0 = arith.constant 0 : i32
    %c0_i32_1 = arith.constant 0 : i32
    return %arg0, %c0_i32, %c0_i32_0 : i32, i32, i32
  }
}

</mosaic_0001>

<llo_original>
// kernel: tpu_custom_call.1
$region0: #{tpu_custom_call.1}
  #allocation0 [shape = 'u32[]', space=smem, size = 0x4, offset = 0x4, fixed_abs, tag = 'smem constant byte address 0x4 - core index']
  #allocation1 [shape = 'u32[72,128]{1,0:T(1,128)}', space=vmem, size = 0x9000, scoped, tag = 'internal scratch']
  %s0 = inlined_call_operand.vmem [shape: f32[2,8,32], index: 0, kind: input, shape index: {}]
  %s1 = inlined_call_operand.vmem [shape: f32[8,32], index: 1, kind: input, shape index: {}]
  %s2 = inlined_call_operand.vmem [shape: bf16[2,2,32,16], index: 2, kind: input, shape index: {}]
  %s3 = inlined_call_operand.vmem [shape: f32[2,2,1,16], index: 3, kind: input, shape index: {}]
  %s4 = inlined_call_operand.vmem [shape: bf16[2,2,32,16], index: 4, kind: input, shape index: {}]
  %s5 = inlined_call_operand.vmem [shape: f32[2,2,1,16], index: 5, kind: input, shape index: {}]
  %s6 = inlined_call_operand.vmem [shape: bf16[2,2,32,16], index: 6, kind: input, shape index: {}]
  %s7 = inlined_call_operand.vmem [shape: f32[2,2,1,16], index: 7, kind: input, shape index: {}]
  %s8 = inlined_call_operand.vmem [shape: bf16[2,2,16,32], index: 8, kind: input, shape index: {}]
  %s9 = inlined_call_operand.vmem [shape: f32[2,1,32], index: 9, kind: input, shape index: {}]
  %s10 = inlined_call_operand.vmem [shape: bf16[2,32,64], index: 10, kind: input, shape index: {}]
  %s11 = inlined_call_operand.vmem [shape: f32[2,1,64], index: 11, kind: input, shape index: {}]
  %s12 = inlined_call_operand.vmem [shape: bf16[2,64,32], index: 12, kind: input, shape index: {}]
  %s13 = inlined_call_operand.vmem [shape: f32[2,1,32], index: 13, kind: input, shape index: {}]
  %s14 = inlined_call_operand.vmem [shape: f32[2,1,32], index: 14, kind: input, shape index: {}]
  %s15 = inlined_call_operand.vmem [shape: f32[2,1,32], index: 15, kind: input, shape index: {}]
  %s16 = inlined_call_operand.vmem [shape: f32[2,1,32], index: 16, kind: input, shape index: {}]
  %s17 = inlined_call_operand.vmem [shape: f32[2,1,32], index: 17, kind: input, shape index: {}]
  %s18 = inlined_call_operand.vmem [shape: bf16[32,128], index: 18, kind: input, shape index: {}]
  %s19 = inlined_call_operand.vmem [shape: f32[1,128], index: 19, kind: input, shape index: {}]
  %s20 = inlined_call_operand.hbm [shape: f32[2,8,128], index: 20, kind: output, shape index: {}]
  %s21 = sld [smem:[#allocation0]]
  $region113: #{tpu_custom_call.1} parent=0
    _
  %s23 = ssub.s32 1, %s21
  %s24 = scalar_select 0, %s23, %s21
  $region1: #{tpu_custom_call.1} parent=0
    #allocation2 [shape = 'u8[8192]{0}', space=vmem, size = 0x2000, scoped, tag = 'output window, operand 0']
    #allocation3 [shape = 's32[2]{0}', space=sflag, size = 0x8, scoped, tag = 'scoped memory for tpu_custom_call.1']
    %25 = vsyncpa [#allocation3], 0
    %s26 = scalar_lea.sflag [#allocation3], 1
    %27 = vsyncpa %s26, 0
    loop: start=0, step=1, limit=4
    $region2: #{tpu_custom_call.1} parent=1 // loop_pre_header
      _
    $region3: #{tpu_custom_call.1} parent=1 // loop_header
      %s29 = sphi 0, %s33
      %p30 = scmp.ge.s32.totalorder %s29, 4
      %s39 = sphi 0, %s41
      %s42 = sphi 0, %s39
      %s43 = sphi 0, %s42
      %s59 = sphi 0, %s43
      %s63 = sphi 0, %s63
      %s65 = sphi 0, %s63
      %s66 = sphi 0, %s65
      %s80 = sphi 0, %s66
      %s84 = sphi 0, %s84
      %s86 = sphi 0, %s84
      %s87 = sphi 0, %s86
      %s101 = sphi 0, %s87
      %s105 = sphi 0, %s105
      %s107 = sphi 0, %s105
      %s108 = sphi 0, %s107
      %s122 = sphi 0, %s108
      %s126 = sphi 0, %s126
      %s128 = sphi 0, %s126
      %s129 = sphi 0, %s128
      %s143 = sphi 0, %s129
      %s147 = sphi 0, %s147
      %s149 = sphi 0, %s147
      %s150 = sphi 0, %s149
      %s164 = sphi 0, %s150
      %s168 = sphi 0, %s168
      %s170 = sphi 0, %s168
      %s171 = sphi 0, %s170
      %s185 = sphi 0, %s171
      %s189 = sphi 0, %s189
      %s191 = sphi 0, %s189
      %s192 = sphi 0, %s191
      %s206 = sphi 0, %s192
      %s210 = sphi 0, %s210
      %s212 = sphi 0, %s210
      %s213 = sphi 0, %s212
      %s227 = sphi 0, %s213
      %s231 = sphi 0, %s231
      %s233 = sphi 0, %s231
      %s234 = sphi 0, %s233
      %s248 = sphi 0, %s234
      %s252 = sphi 0, %s252
      %s254 = sphi 0, %s252
      %s255 = sphi 0, %s254
      %s269 = sphi 0, %s255
      %s273 = sphi 0, %s273
      %s275 = sphi 0, %s273
      %s276 = sphi 0, %s275
      %s290 = sphi 0, %s276
      %s294 = sphi 0, %s294
      %s296 = sphi 0, %s294
      %s297 = sphi 0, %s296
      %s311 = sphi 0, %s297
      %s315 = sphi 0, %s315
      %s317 = sphi 0, %s315
      %s318 = sphi 0, %s317
      %s332 = sphi 0, %s318
      %s336 = sphi 0, %s336
      %s338 = sphi 0, %s336
      %s339 = sphi 0, %s338
      %s353 = sphi 0, %s339
      %s357 = sphi 0, %s357
      %s359 = sphi 0, %s357
      %s360 = sphi 0, %s359
      %s374 = sphi 0, %s360
      %s378 = sphi 0, %s378
      %s380 = sphi 0, %s378
      %s381 = sphi 0, %s380
      %s395 = sphi 0, %s381
      %s399 = sphi 0, %s399
      %s401 = sphi 0, %s399
      %s402 = sphi 0, %s401
      %s416 = sphi 0, %s402
      %s420 = sphi 0, %s420
      %s422 = sphi 0, %s420
      %s423 = sphi 0, %s422
      %s437 = sphi 0, %s423
      %s441 = sphi 0, %s441
      %s443 = sphi 0, %s441
      %s444 = sphi 0, %s443
      %s458 = sphi 0, %s444
      %s464 = sphi 0, %s466
      %s467 = sphi 0, %s464
      %s468 = sphi 0, %s467
      %s484 = sphi 0, %s468
    $region4: #{tpu_custom_call.1} parent=1 // loop_header_branch
      %32 = sbr.rel (%p30) target = $region8
    $region5: #{tpu_custom_call.1} parent=1 // loop_body
      %s34 = ssub.s32 %s29, 1
      %s35 = ssub.s32 %s29, 2
      %s36 = sadd.s32 %s29, 1
      %s37 = ssub.s32 %s29, %s36
      %p38 = scmp.eq.s32.totalorder %s37, 0
      %s40 = sadd.s32 %s39, 1
      %s41 = scalar_select %p38, %s39, %s40
      %p44 = pneg %p38
      %p45 = scmp.eq.s32.totalorder %s29, 1
      %p46 = por %p44, %p45
      %p47 = scmp.ne.s32.totalorder %s39, %s42
      %p48 = scmp.eq.s32.totalorder %s29, 0
      %p49 = por %p47, %p48
      %p50 = scmp.ne.s32.totalorder %s39, %s42
      %p51 = scmp.eq.s32.totalorder %s34, 1
      %p52 = por %p50, %p51
      %p53 = scmp.ne.s32.totalorder %s42, %s43
      %p54 = scmp.eq.s32.totalorder %s34, 0
      %p55 = por %p53, %p54
      %p56 = scmp.ne.s32.totalorder %s42, %s43
      %p57 = scmp.eq.s32.totalorder %s35, 1
      %p58 = por %p56, %p57
      %p60 = scmp.ne.s32.totalorder %s43, %s59
      %p61 = scmp.eq.s32.totalorder %s35, 0
      %p62 = por %p60, %p61
      %s64 = sadd.s32 %s63, 1
      %p67 = scmp.eq.s32.totalorder %s29, 1
      %p68 = scmp.ne.s32.totalorder %s63, %s65
      %p69 = scmp.eq.s32.totalorder %s29, 0
      %p70 = por %p68, %p69
      %p71 = scmp.ne.s32.totalorder %s63, %s65
      %p72 = scmp.eq.s32.totalorder %s34, 1
      %p73 = por %p71, %p72
      %p74 = scmp.ne.s32.totalorder %s65, %s66
      %p75 = scmp.eq.s32.totalorder %s34, 0
      %p76 = por %p74, %p75
      %p77 = scmp.ne.s32.totalorder %s65, %s66
      %p78 = scmp.eq.s32.totalorder %s35, 1
      %p79 = por %p77, %p78
      %p81 = scmp.ne.s32.totalorder %s66, %s80
      %p82 = scmp.eq.s32.totalorder %s35, 0
      %p83 = por %p81, %p82
      %s85 = sadd.s32 %s84, 1
      %p88 = scmp.eq.s32.totalorder %s29, 1
      %p89 = scmp.ne.s32.totalorder %s84, %s86
      %p90 = scmp.eq.s32.totalorder %s29, 0
      %p91 = por %p89, %p90
      %p92 = scmp.ne.s32.totalorder %s84, %s86
      %p93 = scmp.eq.s32.totalorder %s34, 1
      %p94 = por %p92, %p93
      %p95 = scmp.ne.s32.totalorder %s86, %s87
      %p96 = scmp.eq.s32.totalorder %s34, 0
      %p97 = por %p95, %p96
      %p98 = scmp.ne.s32.totalorder %s86, %s87
      %p99 = scmp.eq.s32.totalorder %s35, 1
      %p100 = por %p98, %p99
      %p102 = scmp.ne.s32.totalorder %s87, %s101
      %p103 = scmp.eq.s32.totalorder %s35, 0
      %p104 = por %p102, %p103
      %s106 = sadd.s32 %s105, 1
      %p109 = scmp.eq.s32.totalorder %s29, 1
      %p110 = scmp.ne.s32.totalorder %s105, %s107
      %p111 = scmp.eq.s32.totalorder %s29, 0
      %p112 = por %p110, %p111
      %p113 = scmp.ne.s32.totalorder %s105, %s107
      %p114 = scmp.eq.s32.totalorder %s34, 1
      %p115 = por %p113, %p114
      %p116 = scmp.ne.s32.totalorder %s107, %s108
      %p117 = scmp.eq.s32.totalorder %s34, 0
      %p118 = por %p116, %p117
      %p119 = scmp.ne.s32.totalorder %s107, %s108
      %p120 = scmp.eq.s32.totalorder %s35, 1
      %p121 = por %p119, %p120
      %p123 = scmp.ne.s32.totalorder %s108, %s122
      %p124 = scmp.eq.s32.totalorder %s35, 0
      %p125 = por %p123, %p124
      %s127 = sadd.s32 %s126, 1
      %p130 = scmp.eq.s32.totalorder %s29, 1
      %p131 = scmp.ne.s32.totalorder %s126, %s128
      %p132 = scmp.eq.s32.totalorder %s29, 0
      %p133 = por %p131, %p132
      %p134 = scmp.ne.s32.totalorder %s126, %s128
      %p135 = scmp.eq.s32.totalorder %s34, 1
      %p136 = por %p134, %p135
      %p137 = scmp.ne.s32.totalorder %s128, %s129
      %p138 = scmp.eq.s32.totalorder %s34, 0
      %p139 = por %p137, %p138
      %p140 = scmp.ne.s32.totalorder %s128, %s129
      %p141 = scmp.eq.s32.totalorder %s35, 1
      %p142 = por %p140, %p141
      %p144 = scmp.ne.s32.totalorder %s129, %s143
      %p145 = scmp.eq.s32.totalorder %s35, 0
      %p146 = por %p144, %p145
      %s148 = sadd.s32 %s147, 1
      %p151 = scmp.eq.s32.totalorder %s29, 1
      %p152 = scmp.ne.s32.totalorder %s147, %s149
      %p153 = scmp.eq.s32.totalorder %s29, 0
      %p154 = por %p152, %p153
      %p155 = scmp.ne.s32.totalorder %s147, %s149
      %p156 = scmp.eq.s32.totalorder %s34, 1
      %p157 = por %p155, %p156
      %p158 = scmp.ne.s32.totalorder %s149, %s150
      %p159 = scmp.eq.s32.totalorder %s34, 0
      %p160 = por %p158, %p159
      %p161 = scmp.ne.s32.totalorder %s149, %s150
      %p162 = scmp.eq.s32.totalorder %s35, 1
      %p163 = por %p161, %p162
      %p165 = scmp.ne.s32.totalorder %s150, %s164
      %p166 = scmp.eq.s32.totalorder %s35, 0
      %p167 = por %p165, %p166
      %s169 = sadd.s32 %s168, 1
      %p172 = scmp.eq.s32.totalorder %s29, 1
      %p173 = scmp.ne.s32.totalorder %s168, %s170
      %p174 = scmp.eq.s32.totalorder %s29, 0
      %p175 = por %p173, %p174
      %p176 = scmp.ne.s32.totalorder %s168, %s170
      %p177 = scmp.eq.s32.totalorder %s34, 1
      %p178 = por %p176, %p177
      %p179 = scmp.ne.s32.totalorder %s170, %s171
      %p180 = scmp.eq.s32.totalorder %s34, 0
      %p181 = por %p179, %p180
      %p182 = scmp.ne.s32.totalorder %s170, %s171
      %p183 = scmp.eq.s32.totalorder %s35, 1
      %p184 = por %p182, %p183
      %p186 = scmp.ne.s32.totalorder %s171, %s185
      %p187 = scmp.eq.s32.totalorder %s35, 0
      %p188 = por %p186, %p187
      %s190 = sadd.s32 %s189, 1
      %p193 = scmp.eq.s32.totalorder %s29, 1
      %p194 = scmp.ne.s32.totalorder %s189, %s191
      %p195 = scmp.eq.s32.totalorder %s29, 0
      %p196 = por %p194, %p195
      %p197 = scmp.ne.s32.totalorder %s189, %s191
      %p198 = scmp.eq.s32.totalorder %s34, 1
      %p199 = por %p197, %p198
      %p200 = scmp.ne.s32.totalorder %s191, %s192
      %p201 = scmp.eq.s32.totalorder %s34, 0
      %p202 = por %p200, %p201
      %p203 = scmp.ne.s32.totalorder %s191, %s192
      %p204 = scmp.eq.s32.totalorder %s35, 1
      %p205 = por %p203, %p204
      %p207 = scmp.ne.s32.totalorder %s192, %s206
      %p208 = scmp.eq.s32.totalorder %s35, 0
      %p209 = por %p207, %p208
      %s211 = sadd.s32 %s210, 1
      %p214 = scmp.eq.s32.totalorder %s29, 1
      %p215 = scmp.ne.s32.totalorder %s210, %s212
      %p216 = scmp.eq.s32.totalorder %s29, 0
      %p217 = por %p215, %p216
      %p218 = scmp.ne.s32.totalorder %s210, %s212
      %p219 = scmp.eq.s32.totalorder %s34, 1
      %p220 = por %p218, %p219
      %p221 = scmp.ne.s32.totalorder %s212, %s213
      %p222 = scmp.eq.s32.totalorder %s34, 0
      %p223 = por %p221, %p222
      %p224 = scmp.ne.s32.totalorder %s212, %s213
      %p225 = scmp.eq.s32.totalorder %s35, 1
      %p226 = por %p224, %p225
      %p228 = scmp.ne.s32.totalorder %s213, %s227
      %p229 = scmp.eq.s32.totalorder %s35, 0
      %p230 = por %p228, %p229
      %s232 = sadd.s32 %s231, 1
      %p235 = scmp.eq.s32.totalorder %s29, 1
      %p236 = scmp.ne.s32.totalorder %s231, %s233
      %p237 = scmp.eq.s32.totalorder %s29, 0
      %p238 = por %p236, %p237
      %p239 = scmp.ne.s32.totalorder %s231, %s233
      %p240 = scmp.eq.s32.totalorder %s34, 1
      %p241 = por %p239, %p240
      %p242 = scmp.ne.s32.totalorder %s233, %s234
      %p243 = scmp.eq.s32.totalorder %s34, 0
      %p244 = por %p242, %p243
      %p245 = scmp.ne.s32.totalorder %s233, %s234
      %p246 = scmp.eq.s32.totalorder %s35, 1
      %p247 = por %p245, %p246
      %p249 = scmp.ne.s32.totalorder %s234, %s248
      %p250 = scmp.eq.s32.totalorder %s35, 0
      %p251 = por %p249, %p250
      %s253 = sadd.s32 %s252, 1
      %p256 = scmp.eq.s32.totalorder %s29, 1
      %p257 = scmp.ne.s32.totalorder %s252, %s254
      %p258 = scmp.eq.s32.totalorder %s29, 0
      %p259 = por %p257, %p258
      %p260 = scmp.ne.s32.totalorder %s252, %s254
      %p261 = scmp.eq.s32.totalorder %s34, 1
      %p262 = por %p260, %p261
      %p263 = scmp.ne.s32.totalorder %s254, %s255
      %p264 = scmp.eq.s32.totalorder %s34, 0
      %p265 = por %p263, %p264
      %p266 = scmp.ne.s32.totalorder %s254, %s255
      %p267 = scmp.eq.s32.totalorder %s35, 1
      %p268 = por %p266, %p267
      %p270 = scmp.ne.s32.totalorder %s255, %s269
      %p271 = scmp.eq.s32.totalorder %s35, 0
      %p272 = por %p270, %p271
      %s274 = sadd.s32 %s273, 1
      %p277 = scmp.eq.s32.totalorder %s29, 1
      %p278 = scmp.ne.s32.totalorder %s273, %s275
      %p279 = scmp.eq.s32.totalorder %s29, 0
      %p280 = por %p278, %p279
      %p281 = scmp.ne.s32.totalorder %s273, %s275
      %p282 = scmp.eq.s32.totalorder %s34, 1
      %p283 = por %p281, %p282
      %p284 = scmp.ne.s32.totalorder %s275, %s276
      %p285 = scmp.eq.s32.totalorder %s34, 0
      %p286 = por %p284, %p285
      %p287 = scmp.ne.s32.totalorder %s275, %s276
      %p288 = scmp.eq.s32.totalorder %s35, 1
      %p289 = por %p287, %p288
      %p291 = scmp.ne.s32.totalorder %s276, %s290
      %p292 = scmp.eq.s32.totalorder %s35, 0
      %p293 = por %p291, %p292
      %s295 = sadd.s32 %s294, 1
      %p298 = scmp.eq.s32.totalorder %s29, 1
      %p299 = scmp.ne.s32.totalorder %s294, %s296
      %p300 = scmp.eq.s32.totalorder %s29, 0
      %p301 = por %p299, %p300
      %p302 = scmp.ne.s32.totalorder %s294, %s296
      %p303 = scmp.eq.s32.totalorder %s34, 1
      %p304 = por %p302, %p303
      %p305 = scmp.ne.s32.totalorder %s296, %s297
      %p306 = scmp.eq.s32.totalorder %s34, 0
      %p307 = por %p305, %p306
      %p308 = scmp.ne.s32.totalorder %s296, %s297
      %p309 = scmp.eq.s32.totalorder %s35, 1
      %p310 = por %p308, %p309
      %p312 = scmp.ne.s32.totalorder %s297, %s311
      %p313 = scmp.eq.s32.totalorder %s35, 0
      %p314 = por %p312, %p313
      %s316 = sadd.s32 %s315, 1
      %p319 = scmp.eq.s32.totalorder %s29, 1
      %p320 = scmp.ne.s32.totalorder %s315, %s317
      %p321 = scmp.eq.s32.totalorder %s29, 0
      %p322 = por %p320, %p321
      %p323 = scmp.ne.s32.totalorder %s315, %s317
      %p324 = scmp.eq.s32.totalorder %s34, 1
      %p325 = por %p323, %p324
      %p326 = scmp.ne.s32.totalorder %s317, %s318
      %p327 = scmp.eq.s32.totalorder %s34, 0
      %p328 = por %p326, %p327
      %p329 = scmp.ne.s32.totalorder %s317, %s318
      %p330 = scmp.eq.s32.totalorder %s35, 1
      %p331 = por %p329, %p330
      %p333 = scmp.ne.s32.totalorder %s318, %s332
      %p334 = scmp.eq.s32.totalorder %s35, 0
      %p335 = por %p333, %p334
      %s337 = sadd.s32 %s336, 1
      %p340 = scmp.eq.s32.totalorder %s29, 1
      %p341 = scmp.ne.s32.totalorder %s336, %s338
      %p342 = scmp.eq.s32.totalorder %s29, 0
      %p343 = por %p341, %p342
      %p344 = scmp.ne.s32.totalorder %s336, %s338
      %p345 = scmp.eq.s32.totalorder %s34, 1
      %p346 = por %p344, %p345
      %p347 = scmp.ne.s32.totalorder %s338, %s339
      %p348 = scmp.eq.s32.totalorder %s34, 0
      %p349 = por %p347, %p348
      %p350 = scmp.ne.s32.totalorder %s338, %s339
      %p351 = scmp.eq.s32.totalorder %s35, 1
      %p352 = por %p350, %p351
      %p354 = scmp.ne.s32.totalorder %s339, %s353
      %p355 = scmp.eq.s32.totalorder %s35, 0
      %p356 = por %p354, %p355
      %s358 = sadd.s32 %s357, 1
      %p361 = scmp.eq.s32.totalorder %s29, 1
      %p362 = scmp.ne.s32.totalorder %s357, %s359
      %p363 = scmp.eq.s32.totalorder %s29, 0
      %p364 = por %p362, %p363
      %p365 = scmp.ne.s32.totalorder %s357, %s359
      %p366 = scmp.eq.s32.totalorder %s34, 1
      %p367 = por %p365, %p366
      %p368 = scmp.ne.s32.totalorder %s359, %s360
      %p369 = scmp.eq.s32.totalorder %s34, 0
      %p370 = por %p368, %p369
      %p371 = scmp.ne.s32.totalorder %s359, %s360
      %p372 = scmp.eq.s32.totalorder %s35, 1
      %p373 = por %p371, %p372
      %p375 = scmp.ne.s32.totalorder %s360, %s374
      %p376 = scmp.eq.s32.totalorder %s35, 0
      %p377 = por %p375, %p376
      %s379 = sadd.s32 %s378, 1
      %p382 = scmp.eq.s32.totalorder %s29, 1
      %p383 = scmp.ne.s32.totalorder %s378, %s380
      %p384 = scmp.eq.s32.totalorder %s29, 0
      %p385 = por %p383, %p384
      %p386 = scmp.ne.s32.totalorder %s378, %s380
      %p387 = scmp.eq.s32.totalorder %s34, 1
      %p388 = por %p386, %p387
      %p389 = scmp.ne.s32.totalorder %s380, %s381
      %p390 = scmp.eq.s32.totalorder %s34, 0
      %p391 = por %p389, %p390
      %p392 = scmp.ne.s32.totalorder %s380, %s381
      %p393 = scmp.eq.s32.totalorder %s35, 1
      %p394 = por %p392, %p393
      %p396 = scmp.ne.s32.totalorder %s381, %s395
      %p397 = scmp.eq.s32.totalorder %s35, 0
      %p398 = por %p396, %p397
      %s400 = sadd.s32 %s399, 1
      %p403 = scmp.eq.s32.totalorder %s29, 1
      %p404 = scmp.ne.s32.totalorder %s399, %s401
      %p405 = scmp.eq.s32.totalorder %s29, 0
      %p406 = por %p404, %p405
      %p407 = scmp.ne.s32.totalorder %s399, %s401
      %p408 = scmp.eq.s32.totalorder %s34, 1
      %p409 = por %p407, %p408
      %p410 = scmp.ne.s32.totalorder %s401, %s402
      %p411 = scmp.eq.s32.totalorder %s34, 0
      %p412 = por %p410, %p411
      %p413 = scmp.ne.s32.totalorder %s401, %s402
      %p414 = scmp.eq.s32.totalorder %s35, 1
      %p415 = por %p413, %p414
      %p417 = scmp.ne.s32.totalorder %s402, %s416
      %p418 = scmp.eq.s32.totalorder %s35, 0
      %p419 = por %p417, %p418
      %s421 = sadd.s32 %s420, 1
      %p424 = scmp.eq.s32.totalorder %s29, 1
      %p425 = scmp.ne.s32.totalorder %s420, %s422
      %p426 = scmp.eq.s32.totalorder %s29, 0
      %p427 = por %p425, %p426
      %p428 = scmp.ne.s32.totalorder %s420, %s422
      %p429 = scmp.eq.s32.totalorder %s34, 1
      %p430 = por %p428, %p429
      %p431 = scmp.ne.s32.totalorder %s422, %s423
      %p432 = scmp.eq.s32.totalorder %s34, 0
      %p433 = por %p431, %p432
      %p434 = scmp.ne.s32.totalorder %s422, %s423
      %p435 = scmp.eq.s32.totalorder %s35, 1
      %p436 = por %p434, %p435
      %p438 = scmp.ne.s32.totalorder %s423, %s437
      %p439 = scmp.eq.s32.totalorder %s35, 0
      %p440 = por %p438, %p439
      %s442 = sadd.s32 %s441, 1
      %p445 = scmp.eq.s32.totalorder %s29, 1
      %p446 = scmp.ne.s32.totalorder %s441, %s443
      %p447 = scmp.eq.s32.totalorder %s29, 0
      %p448 = por %p446, %p447
      %p449 = scmp.ne.s32.totalorder %s441, %s443
      %p450 = scmp.eq.s32.totalorder %s34, 1
      %p451 = por %p449, %p450
      %p452 = scmp.ne.s32.totalorder %s443, %s444
      %p453 = scmp.eq.s32.totalorder %s34, 0
      %p454 = por %p452, %p453
      %p455 = scmp.ne.s32.totalorder %s443, %s444
      %p456 = scmp.eq.s32.totalorder %s35, 1
      %p457 = por %p455, %p456
      %p459 = scmp.ne.s32.totalorder %s444, %s458
      %p460 = scmp.eq.s32.totalorder %s35, 0
      %p461 = por %p459, %p460
      %s462 = ssub.s32 %s29, %s36
      %p463 = scmp.eq.s32.totalorder %s462, 0
      %s465 = sadd.s32 %s464, 1
      %s466 = scalar_select %p463, %s464, %s465
      %p469 = pneg %p463
      %p470 = scmp.eq.s32.totalorder %s29, 1
      %p471 = por %p469, %p470
      %p472 = scmp.ne.s32.totalorder %s464, %s467
      %p473 = scmp.eq.s32.totalorder %s29, 0
      %p474 = por %p472, %p473
      %p475 = scmp.ne.s32.totalorder %s464, %s467
      %p476 = scmp.eq.s32.totalorder %s34, 1
      %p477 = por %p475, %p476
      %p478 = scmp.ne.s32.totalorder %s467, %s468
      %p479 = scmp.eq.s32.totalorder %s34, 0
      %p480 = por %p478, %p479
      %p481 = scmp.ne.s32.totalorder %s467, %s468
      %p482 = scmp.eq.s32.totalorder %s35, 1
      %p483 = por %p481, %p482
      %p485 = scmp.ne.s32.totalorder %s468, %s484
      %p486 = scmp.eq.s32.totalorder %s35, 0
      %p487 = por %p485, %p486
      %p488 = scmp.le.s32.totalorder 1, %s29
      %p489 = scmp.lt.s32.totalorder %s29, 3
      %p490 = pnand %p488, %p489
      %p491 = pneg %p490
      // Predicated region
      $region9: #{tpu_custom_call.1} parent=5 // pred_check
        _
      $region10: #{tpu_custom_call.1} parent=5 // pred_check_branch
        %493 = sbr.rel (%p490) target = $region12
      $region11: #{tpu_custom_call.1} parent=5 // pred_region
        %s494 = ssub.s32 %s29, 1
        // Predicated region
        $region13: #{tpu_custom_call.1} parent=11 // pred_check
          %p495 = pneg %p76
        $region14: #{tpu_custom_call.1} parent=11 // pred_check_branch
          %497 = sbr.rel (%p495) target = $region16
        $region15: #{tpu_custom_call.1} parent=11 // pred_region
          _
        $region16: #{tpu_custom_call.1} parent=11 // pred_fallthru
          _
        // Predicated region
        $region17: #{tpu_custom_call.1} parent=11 // pred_check
          %p498 = pneg %p97
        $region18: #{tpu_custom_call.1} parent=11 // pred_check_branch
          %500 = sbr.rel (%p498) target = $region20
        $region19: #{tpu_custom_call.1} parent=11 // pred_region
          _
        $region20: #{tpu_custom_call.1} parent=11 // pred_fallthru
          _
        // Predicated region
        $region21: #{tpu_custom_call.1} parent=11 // pred_check
          %p501 = pneg %p118
        $region22: #{tpu_custom_call.1} parent=11 // pred_check_branch
          %503 = sbr.rel (%p501) target = $region24
        $region23: #{tpu_custom_call.1} parent=11 // pred_region
          _
        $region24: #{tpu_custom_call.1} parent=11 // pred_fallthru
          _
        // Predicated region
        $region25: #{tpu_custom_call.1} parent=11 // pred_check
          %p504 = pneg %p139
        $region26: #{tpu_custom_call.1} parent=11 // pred_check_branch
          %506 = sbr.rel (%p504) target = $region28
        $region27: #{tpu_custom_call.1} parent=11 // pred_region
          _
        $region28: #{tpu_custom_call.1} parent=11 // pred_fallthru
          _
        // Predicated region
        $region29: #{tpu_custom_call.1} parent=11 // pred_check
          %p507 = pneg %p160
        $region30: #{tpu_custom_call.1} parent=11 // pred_check_branch
          %509 = sbr.rel (%p507) target = $region32
        $region31: #{tpu_custom_call.1} parent=11 // pred_region
          _
        $region32: #{tpu_custom_call.1} parent=11 // pred_fallthru
          _
        // Predicated region
        $region33: #{tpu_custom_call.1} parent=11 // pred_check
          %p510 = pneg %p181
        $region34: #{tpu_custom_call.1} parent=11 // pred_check_branch
          %512 = sbr.rel (%p510) target = $region36
        $region35: #{tpu_custom_call.1} parent=11 // pred_region
          _
        $region36: #{tpu_custom_call.1} parent=11 // pred_fallthru
          _
        // Predicated region
        $region37: #{tpu_custom_call.1} parent=11 // pred_check
          %p513 = pneg %p202
        $region38: #{tpu_custom_call.1} parent=11 // pred_check_branch
          %515 = sbr.rel (%p513) target = $region40
        $region39: #{tpu_custom_call.1} parent=11 // pred_region
          _
        $region40: #{tpu_custom_call.1} parent=11 // pred_fallthru
          _
        // Predicated region
        $region41: #{tpu_custom_call.1} parent=11 // pred_check
          %p516 = pneg %p223
        $region42: #{tpu_custom_call.1} parent=11 // pred_check_branch
          %518 = sbr.rel (%p516) target = $region44
        $region43: #{tpu_custom_call.1} parent=11 // pred_region
          _
        $region44: #{tpu_custom_call.1} parent=11 // pred_fallthru
          _
        // Predicated region
        $region45: #{tpu_custom_call.1} parent=11 // pred_check
          %p519 = pneg %p244
        $region46: #{tpu_custom_call.1} parent=11 // pred_check_branch
          %521 = sbr.rel (%p519) target = $region48
        $region47: #{tpu_custom_call.1} parent=11 // pred_region
          _
        $region48: #{tpu_custom_call.1} parent=11 // pred_fallthru
          _
        // Predicated region
        $region49: #{tpu_custom_call.1} parent=11 // pred_check
          %p522 = pneg %p265
        $region50: #{tpu_custom_call.1} parent=11 // pred_check_branch
          %524 = sbr.rel (%p522) target = $region52
        $region51: #{tpu_custom_call.1} parent=11 // pred_region
          _
        $region52: #{tpu_custom_call.1} parent=11 // pred_fallthru
          _
        // Predicated region
        $region53: #{tpu_custom_call.1} parent=11 // pred_check
          %p525 = pneg %p286
        $region54: #{tpu_custom_call.1} parent=11 // pred_check_branch
          %527 = sbr.rel (%p525) target = $region56
        $region55: #{tpu_custom_call.1} parent=11 // pred_region
          _
        $region56: #{tpu_custom_call.1} parent=11 // pred_fallthru
          _
        // Predicated region
        $region57: #{tpu_custom_call.1} parent=11 // pred_check
          %p528 = pneg %p307
        $region58: #{tpu_custom_call.1} parent=11 // pred_check_branch
          %530 = sbr.rel (%p528) target = $region60
        $region59: #{tpu_custom_call.1} parent=11 // pred_region
          _
        $region60: #{tpu_custom_call.1} parent=11 // pred_fallthru
          _
        // Predicated region
        $region61: #{tpu_custom_call.1} parent=11 // pred_check
          %p531 = pneg %p328
        $region62: #{tpu_custom_call.1} parent=11 // pred_check_branch
          %533 = sbr.rel (%p531) target = $region64
        $region63: #{tpu_custom_call.1} parent=11 // pred_region
          _
        $region64: #{tpu_custom_call.1} parent=11 // pred_fallthru
          _
        // Predicated region
        $region65: #{tpu_custom_call.1} parent=11 // pred_check
          %p534 = pneg %p349
        $region66: #{tpu_custom_call.1} parent=11 // pred_check_branch
          %536 = sbr.rel (%p534) target = $region68
        $region67: #{tpu_custom_call.1} parent=11 // pred_region
          _
        $region68: #{tpu_custom_call.1} parent=11 // pred_fallthru
          _
        // Predicated region
        $region69: #{tpu_custom_call.1} parent=11 // pred_check
          %p537 = pneg %p370
        $region70: #{tpu_custom_call.1} parent=11 // pred_check_branch
          %539 = sbr.rel (%p537) target = $region72
        $region71: #{tpu_custom_call.1} parent=11 // pred_region
          _
        $region72: #{tpu_custom_call.1} parent=11 // pred_fallthru
          _
        // Predicated region
        $region73: #{tpu_custom_call.1} parent=11 // pred_check
          %p540 = pneg %p391
        $region74: #{tpu_custom_call.1} parent=11 // pred_check_branch
          %542 = sbr.rel (%p540) target = $region76
        $region75: #{tpu_custom_call.1} parent=11 // pred_region
          _
        $region76: #{tpu_custom_call.1} parent=11 // pred_fallthru
          _
        // Predicated region
        $region77: #{tpu_custom_call.1} parent=11 // pred_check
          %p543 = pneg %p412
        $region78: #{tpu_custom_call.1} parent=11 // pred_check_branch
          %545 = sbr.rel (%p543) target = $region80
        $region79: #{tpu_custom_call.1} parent=11 // pred_region
          _
        $region80: #{tpu_custom_call.1} parent=11 // pred_fallthru
          _
        // Predicated region
        $region81: #{tpu_custom_call.1} parent=11 // pred_check
          %p546 = pneg %p433
        $region82: #{tpu_custom_call.1} parent=11 // pred_check_branch
          %548 = sbr.rel (%p546) target = $region84
        $region83: #{tpu_custom_call.1} parent=11 // pred_region
          _
        $region84: #{tpu_custom_call.1} parent=11 // pred_fallthru
          _
        // Predicated region
        $region85: #{tpu_custom_call.1} parent=11 // pred_check
          %p549 = pneg %p454
        $region86: #{tpu_custom_call.1} parent=11 // pred_check_branch
          %551 = sbr.rel (%p549) target = $region88
        $region87: #{tpu_custom_call.1} parent=11 // pred_region
          _
        $region88: #{tpu_custom_call.1} parent=11 // pred_fallthru
          _
      $region12: #{tpu_custom_call.1} parent=5 // pred_fallthru
        _
      %p552 = scmp.lt.s32.totalorder %s29, 2
      // Predicated region
      $region89: #{tpu_custom_call.1} parent=5 // pred_check
        %p553 = pneg %p552
      $region90: #{tpu_custom_call.1} parent=5 // pred_check_branch
        %555 = sbr.rel (%p553) target = $region92
      $region91: #{tpu_custom_call.1} parent=5 // pred_region
        // Predicated region
        $region93: #{tpu_custom_call.1} parent=91 // pred_check
          %p556 = pneg %p49
        $region94: #{tpu_custom_call.1} parent=91 // pred_check_branch
          %558 = sbr.rel (%p556) target = $region96
        $region95: #{tpu_custom_call.1} parent=91 // pred_region
          %p559 = scmp.lt.s32.totalorder %s29, 1
          %s560 = scalar_select %p559, %s29, 1
          %s561 = smul.addr %s560, 8
          %s562 = scalar_lea.vmem %s0, %s561
        $region96: #{tpu_custom_call.1} parent=91 // pred_fallthru
          _
      $region92: #{tpu_custom_call.1} parent=5 // pred_fallthru
        _
      %p563 = scmp.le.s32.totalorder 1, %s29
      %p564 = scmp.lt.s32.totalorder %s29, 3
      %p565 = pnand %p563, %p564
      %p566 = pneg %p565
      // Predicated region
      $region97: #{tpu_custom_call.1} parent=5 // pred_check
        _
      $region98: #{tpu_custom_call.1} parent=5 // pred_check_branch
        %568 = sbr.rel (%p565) target = $region100
      $region99: #{tpu_custom_call.1} parent=5 // pred_region
        %s569 = ssub.s32 %s29, 1
        %p570 = scmp.lt.s32.totalorder %s34, 1
        %s571 = scalar_select %p570, %s34, 1
        %s572 = smul.addr %s571, 8
        %s573 = scalar_lea.vmem %s0, %s572
        %p574 = pneg %p55
        %p575 = pneg %p52
        %p576 = pneg %p76
        %p577 = pneg %p73
        %p578 = pneg %p97
        %p579 = pneg %p94
        %p580 = pneg %p118
        %p581 = pneg %p115
        %p582 = pneg %p139
        %p583 = pneg %p136
        %p584 = pneg %p160
        %p585 = pneg %p157
        %p586 = pneg %p181
        %p587 = pneg %p178
        %p588 = pneg %p202
        %p589 = pneg %p199
        %p590 = pneg %p223
        %p591 = pneg %p220
        %p592 = pneg %p244
        %p593 = pneg %p241
        %p594 = pneg %p265
        %p595 = pneg %p262
        %p596 = pneg %p286
        %p597 = pneg %p283
        %p598 = pneg %p307
        %p599 = pneg %p304
        %p600 = pneg %p328
        %p601 = pneg %p325
        %p602 = pneg %p349
        %p603 = pneg %p346
        %p604 = pneg %p370
        %p605 = pneg %p367
        %p606 = pneg %p391
        %p607 = pneg %p388
        %p608 = pneg %p412
        %p609 = pneg %p409
        %p610 = pneg %p433
        %p611 = pneg %p430
        %p612 = pneg %p454
        %p613 = pneg %p451
        %p614 = pneg %p480
        %p615 = pneg %p477
        %s616 = sand.u32 %s467, 1
        %s617 = scalar_lea.sflag [#allocation3], %s616
        %s618 = sand.u32 %s467, 1
        %s619 = smul.addr %s618, 8
        %s620 = scalar_lea.vmem [#allocation2], %s619
        %p621 = scmp.lt.s32.totalorder %s34, 1
        %s622 = scalar_select %p621, %s34, 1
        %s623 = smul.addr %s622, 8
        %s624 = scalar_lea.vmem %s0, %s623
        %v626 = vld [vmem:[%s624] sm:$0xff]
        %v627 = vmul.f32 %v626, 5.656854
        %v628 = vld [vmem:[%s1] sm:$0xff]
        %v629 = vadd.f32 %v627, %v628
        %v630 = vpack.c.bf16 %v629, %v629
        %v631 = vld [vmem:[%s2] sm:$0xf]
        %v632 = vld [vmem:[%s2 + $0x4] sm:$0xf]
        %v633 = vld [vmem:[%s2 + $0x8] sm:$0xf]
        %v634 = vld [vmem:[%s2 + $0xc] sm:$0xf]
        %v635 = vld [vmem:[%s3] sm:$0x1]
        %v637 = vperm.slane %v635, 0
        %v643 = vunpack.c.l.b16 %v631
        %v644 = vunpack.c.l.b16 %v632
        %v645 = vunpack.c.l.b16 %v633
        %v646 = vunpack.c.l.b16 %v634
        %v647 = vpack.c.b16 %v644, %v643
        %v648 = vpack.c.b16 %v646, %v645
        %vm651 = vcmask 261120
        %v653 = vsel %vm651, %v630, 0
        %655 = vmatpush.bf16.msra.mxu0 0
        %656 = vmatpush.bf16.msra.mxu0 0
        %657 = vmatpush.bf16.msra.mxu0 0
        %658 = vmatpush.bf16.msra.mxu0 0
        %659 = vmatpush.bf16.msra.mxu0 0
        %660 = vmatpush.bf16.msra.mxu0 0
        %661 = vmatpush.bf16.msra.mxu0 %v648
        %662 = vmatpush.bf16.msra.mxu0 %v647
        %663 = vmatmul.bf16.gmra.mxu0 %v653
        %v664 = vpop.f32.mrf.mxu0
        %v665 = vadd.f32 %v637, %v664
        %v666 = vpop.f32.mrf.mxu0
        %667 = vdwg.mxu0
        %v668 = vld [vmem:[%s4] sm:$0xf]
        %v669 = vld [vmem:[%s4 + $0x4] sm:$0xf]
        %v670 = vld [vmem:[%s4 + $0x8] sm:$0xf]
        %v671 = vld [vmem:[%s4 + $0xc] sm:$0xf]
        %v672 = vld [vmem:[%s5] sm:$0x1]
        %v674 = vperm.slane %v672, 0
        %v680 = vunpack.c.l.b16 %v668
        %v681 = vunpack.c.l.b16 %v669
        %v682 = vunpack.c.l.b16 %v670
        %v683 = vunpack.c.l.b16 %v671
        %v684 = vpack.c.b16 %v681, %v680
        %v685 = vpack.c.b16 %v683, %v682
        %688 = vmatpush.bf16.msra.mxu0 0
        %689 = vmatpush.bf16.msra.mxu0 0
        %690 = vmatpush.bf16.msra.mxu0 0
        %691 = vmatpush.bf16.msra.mxu0 0
        %692 = vmatpush.bf16.msra.mxu0 0
        %693 = vmatpush.bf16.msra.mxu0 0
        %694 = vmatpush.bf16.msra.mxu0 %v685
        %695 = vmatpush.bf16.msra.mxu0 %v684
        %696 = vmatmul.bf16.gmra.mxu0 %v653
        %v697 = vpop.f32.mrf.mxu0
        %v698 = vadd.f32 %v674, %v697
        %v699 = vpop.f32.mrf.mxu0
        %700 = vdwg.mxu0
        %v701 = vld [vmem:[%s6] sm:$0xf]
        %v702 = vld [vmem:[%s6 + $0x4] sm:$0xf]
        %v703 = vld [vmem:[%s6 + $0x8] sm:$0xf]
        %v704 = vld [vmem:[%s6 + $0xc] sm:$0xf]
        %v705 = vld [vmem:[%s7] sm:$0x1]
        %v707 = vperm.slane %v705, 0
        %v713 = vunpack.c.l.b16 %v701
        %v714 = vunpack.c.l.b16 %v702
        %v715 = vunpack.c.l.b16 %v703
        %v716 = vunpack.c.l.b16 %v704
        %v717 = vpack.c.b16 %v714, %v713
        %v718 = vpack.c.b16 %v716, %v715
        %721 = vmatpush.bf16.msra.mxu0 0
        %722 = vmatpush.bf16.msra.mxu0 0
        %723 = vmatpush.bf16.msra.mxu0 0
        %724 = vmatpush.bf16.msra.mxu0 0
        %725 = vmatpush.bf16.msra.mxu0 0
        %726 = vmatpush.bf16.msra.mxu0 0
        %727 = vmatpush.bf16.msra.mxu0 %v718
        %728 = vmatpush.bf16.msra.mxu0 %v717
        %729 = vmatmul.bf16.gmra.mxu0 %v653
        %v730 = vpop.f32.mrf.mxu0
        %v731 = vadd.f32 %v707, %v730
        %v732 = vpop.f32.mrf.mxu0
        %733 = vdwg.mxu0
        %v734 = vpack.c.bf16 %v665, %v665
        %v735 = vpack.c.bf16 %v698, %v698
        %vm736 = vcmask 130048
        %v738 = vsel %vm736, %v734, 0
        %v741 = vsel %vm736, %v735, 0
        %743 = vmatpush.bf16.xpose.msra.mxu0 0
        %744 = vmatpush.bf16.xpose.msra.mxu0 0
        %745 = vmatpush.bf16.xpose.msra.mxu0 0
        %746 = vmatpush.bf16.xpose.msra.mxu0 0
        %747 = vmatpush.bf16.xpose.msra.mxu0 0
        %748 = vmatpush.bf16.xpose.msra.mxu0 0
        %749 = vmatpush.bf16.xpose.msra.mxu0 0
        %750 = vmatpush.bf16.xpose.msra.mxu0 %v741
        %751 = vmatmul.bf16.gmra.mxu0 %v738
        %v752 = vpop.f32.mrf.mxu0
        %v753 = vadd.f32 0.0, %v752
        %v754 = vpop.f32.mrf.mxu0
        %755 = vdwg.mxu0
        %vm756 = vcmask 64512
        %v757 = vsel %vm756, %v753, -inf
        %758 = vmax.xlane.f32.xlu0 %v757
        %v759 = vpop.xlane.xlu0 %758
        %v760 = vsub.f32 %v753, %v759
        %v761 = vmul.f32 %v760, 1.442695
        %v762 = vpow.pop %v761
        %v763 = vsel %vm756, %v762, 0.0
        %764 = vadd.xlane.f32.xlu0 %v763
        %v765 = vpop.xlane.xlu0 %764
        %v766 = vrcp.pop %v765
        %v767 = vmul.f32 %v762, %v766
        %v768 = vpack.c.bf16 %v767, %v767
        %v769 = vpack.c.bf16 %v731, %v731
        %v771 = vsel %vm756, %v768, 0
        %vm773 = vcmask 1043456
        %v775 = vsel %vm773, %v769, 0
        %777 = vmatpush.bf16.msra.mxu0 0
        %778 = vmatpush.bf16.msra.mxu0 0
        %779 = vmatpush.bf16.msra.mxu0 0
        %780 = vmatpush.bf16.msra.mxu0 0
        %781 = vmatpush.bf16.msra.mxu0 0
        %782 = vmatpush.bf16.msra.mxu0 0
        %783 = vmatpush.bf16.msra.mxu0 0
        %784 = vmatpush.bf16.msra.mxu0 %v775
        %785 = vmatmul.bf16.gmra.mxu0 %v771
        %v786 = vpop.f32.mrf.mxu0
        %v787 = vadd.f32 0.0, %v786
        %v788 = vpop.f32.mrf.mxu0
        %789 = vdwg.mxu0
        %v790 = vpack.c.bf16 %v787, %v787
        %v791 = vld [vmem:[%s8] sm:$0xf]
        %v792 = vld [vmem:[%s8 + $0x4] sm:$0xf]
        %s793 = scalar_lea.vmem %s2, 16
        %v794 = vld [vmem:[%s793] sm:$0xf]
        %v795 = vld [vmem:[%s793 + $0x4] sm:$0xf]
        %v796 = vld [vmem:[%s793 + $0x8] sm:$0xf]
        %v797 = vld [vmem:[%s793 + $0xc] sm:$0xf]
        %s798 = scalar_lea.vmem %s3, 1
        %v799 = vld [vmem:[%s798] sm:$0x1]
        %v801 = vperm.slane %v799, 0
        %v807 = vunpack.c.l.b16 %v794
        %v808 = vunpack.c.l.b16 %v795
        %v809 = vunpack.c.l.b16 %v796
        %v810 = vunpack.c.l.b16 %v797
        %v811 = vpack.c.b16 %v808, %v807
        %v812 = vpack.c.b16 %v810, %v809
        %815 = vmatpush.bf16.msra.mxu0 0
        %816 = vmatpush.bf16.msra.mxu0 0
        %817 = vmatpush.bf16.msra.mxu0 0
        %818 = vmatpush.bf16.msra.mxu0 0
        %819 = vmatpush.bf16.msra.mxu0 0
        %820 = vmatpush.bf16.msra.mxu0 0
        %821 = vmatpush.bf16.msra.mxu0 %v812
        %822 = vmatpush.bf16.msra.mxu0 %v811
        %823 = vmatmul.bf16.gmra.mxu0 %v653
        %v824 = vpop.f32.mrf.mxu0
        %v825 = vadd.f32 %v801, %v824
        %v826 = vpop.f32.mrf.mxu0
        %827 = vdwg.mxu0
        %s828 = scalar_lea.vmem %s4, 16
        %v829 = vld [vmem:[%s828] sm:$0xf]
        %v830 = vld [vmem:[%s828 + $0x4] sm:$0xf]
        %v831 = vld [vmem:[%s828 + $0x8] sm:$0xf]
        %v832 = vld [vmem:[%s828 + $0xc] sm:$0xf]
        %s833 = scalar_lea.vmem %s5, 1
        %v834 = vld [vmem:[%s833] sm:$0x1]
        %v836 = vperm.slane %v834, 0
        %v842 = vunpack.c.l.b16 %v829
        %v843 = vunpack.c.l.b16 %v830
        %v844 = vunpack.c.l.b16 %v831
        %v845 = vunpack.c.l.b16 %v832
        %v846 = vpack.c.b16 %v843, %v842
        %v847 = vpack.c.b16 %v845, %v844
        %850 = vmatpush.bf16.msra.mxu0 0
        %851 = vmatpush.bf16.msra.mxu0 0
        %852 = vmatpush.bf16.msra.mxu0 0
        %853 = vmatpush.bf16.msra.mxu0 0
        %854 = vmatpush.bf16.msra.mxu0 0
        %855 = vmatpush.bf16.msra.mxu0 0
        %856 = vmatpush.bf16.msra.mxu0 %v847
        %857 = vmatpush.bf16.msra.mxu0 %v846
        %858 = vmatmul.bf16.gmra.mxu0 %v653
        %v859 = vpop.f32.mrf.mxu0
        %v860 = vadd.f32 %v836, %v859
        %v861 = vpop.f32.mrf.mxu0
        %862 = vdwg.mxu0
        %s863 = scalar_lea.vmem %s6, 16
        %v864 = vld [vmem:[%s863] sm:$0xf]
        %v865 = vld [vmem:[%s863 + $0x4] sm:$0xf]
        %v866 = vld [vmem:[%s863 + $0x8] sm:$0xf]
        %v867 = vld [vmem:[%s863 + $0xc] sm:$0xf]
        %s868 = scalar_lea.vmem %s7, 1
        %v869 = vld [vmem:[%s868] sm:$0x1]
        %v871 = vperm.slane %v869, 0
        %v877 = vunpack.c.l.b16 %v864
        %v878 = vunpack.c.l.b16 %v865
        %v879 = vunpack.c.l.b16 %v866
        %v880 = vunpack.c.l.b16 %v867
        %v881 = vpack.c.b16 %v878, %v877
        %v882 = vpack.c.b16 %v880, %v879
        %885 = vmatpush.bf16.msra.mxu0 0
        %886 = vmatpush.bf16.msra.mxu0 0
        %887 = vmatpush.bf16.msra.mxu0 0
        %888 = vmatpush.bf16.msra.mxu0 0
        %889 = vmatpush.bf16.msra.mxu0 0
        %890 = vmatpush.bf16.msra.mxu0 0
        %891 = vmatpush.bf16.msra.mxu0 %v882
        %892 = vmatpush.bf16.msra.mxu0 %v881
        %893 = vmatmul.bf16.gmra.mxu0 %v653
        %v894 = vpop.f32.mrf.mxu0
        %v895 = vadd.f32 %v871, %v894
        %v896 = vpop.f32.mrf.mxu0
        %897 = vdwg.mxu0
        %v898 = vpack.c.bf16 %v825, %v825
        %v899 = vpack.c.bf16 %v860, %v860
        %v901 = vsel %vm736, %v898, 0
        %v904 = vsel %vm736, %v899, 0
        %906 = vmatpush.bf16.xpose.msra.mxu0 0
        %907 = vmatpush.bf16.xpose.msra.mxu0 0
        %908 = vmatpush.bf16.xpose.msra.mxu0 0
        %909 = vmatpush.bf16.xpose.msra.mxu0 0
        %910 = vmatpush.bf16.xpose.msra.mxu0 0
        %911 = vmatpush.bf16.xpose.msra.mxu0 0
        %912 = vmatpush.bf16.xpose.msra.mxu0 0
        %913 = vmatpush.bf16.xpose.msra.mxu0 %v904
        %914 = vmatmul.bf16.gmra.mxu0 %v901
        %v915 = vpop.f32.mrf.mxu0
        %v916 = vadd.f32 0.0, %v915
        %v917 = vpop.f32.mrf.mxu0
        %918 = vdwg.mxu0
        %v919 = vsel %vm756, %v916, -inf
        %920 = vmax.xlane.f32.xlu0 %v919
        %v921 = vpop.xlane.xlu0 %920
        %v922 = vsub.f32 %v916, %v921
        %v923 = vmul.f32 %v922, 1.442695
        %v924 = vpow.pop %v923
        %v925 = vsel %vm756, %v924, 0.0
        %926 = vadd.xlane.f32.xlu0 %v925
        %v927 = vpop.xlane.xlu0 %926
        %v928 = vrcp.pop %v927
        %v929 = vmul.f32 %v924, %v928
        %v930 = vpack.c.bf16 %v929, %v929
        %v931 = vpack.c.bf16 %v895, %v895
        %v933 = vsel %vm756, %v930, 0
        %v936 = vsel %vm773, %v931, 0
        %938 = vmatpush.bf16.msra.mxu0 0
        %939 = vmatpush.bf16.msra.mxu0 0
        %940 = vmatpush.bf16.msra.mxu0 0
        %941 = vmatpush.bf16.msra.mxu0 0
        %942 = vmatpush.bf16.msra.mxu0 0
        %943 = vmatpush.bf16.msra.mxu0 0
        %944 = vmatpush.bf16.msra.mxu0 0
        %945 = vmatpush.bf16.msra.mxu0 %v936
        %946 = vmatmul.bf16.gmra.mxu0 %v933
        %v947 = vpop.f32.mrf.mxu0
        %v948 = vadd.f32 0.0, %v947
        %v949 = vpop.f32.mrf.mxu0
        %950 = vdwg.mxu0
        %v951 = vpack.c.bf16 %v948, %v948
        %s952 = scalar_lea.vmem %s8, 8
        %v953 = vld [vmem:[%s952] sm:$0xf]
        %v954 = vld [vmem:[%s952 + $0x4] sm:$0xf]
        %v957 = vunpack.c.l.b16 %v953
        %v958 = vunpack.c.l.b16 %v954
        %v959 = vpack.c.b16 %v958, %v957
        %v962 = vsel %vm736, %v951, 0
        %964 = vmatpush.bf16.msra.mxu0 0
        %965 = vmatpush.bf16.msra.mxu0 0
        %966 = vmatpush.bf16.msra.mxu0 0
        %967 = vmatpush.bf16.msra.mxu0 0
        %968 = vmatpush.bf16.msra.mxu0 0
        %969 = vmatpush.bf16.msra.mxu0 0
        %970 = vmatpush.bf16.msra.mxu0 0
        %971 = vmatpush.bf16.msra.mxu0 %v959
        %972 = vmatmul.bf16.gmra.mxu0 %v962
        %v973 = vpop.f32.mrf.mxu0
        %v974 = vadd.f32 0.0, %v973
        %v975 = vpop.f32.mrf.mxu0
        %976 = vdwg.mxu0
        %v979 = vunpack.c.l.b16 %v791
        %v980 = vunpack.c.l.b16 %v792
        %v981 = vpack.c.b16 %v980, %v979
        %v984 = vsel %vm736, %v790, 0
        %986 = vmatpush.bf16.msra.mxu0 0
        %987 = vmatpush.bf16.msra.mxu0 0
        %988 = vmatpush.bf16.msra.mxu0 0
        %989 = vmatpush.bf16.msra.mxu0 0
        %990 = vmatpush.bf16.msra.mxu0 0
        %991 = vmatpush.bf16.msra.mxu0 0
        %992 = vmatpush.bf16.msra.mxu0 0
        %993 = vmatpush.bf16.msra.mxu0 %v981
        %994 = vmatmul.bf16.gmra.mxu0 %v984
        %v995 = vpop.f32.mrf.mxu0
        %v996 = vadd.f32 %v974, %v995
        %v997 = vpop.f32.mrf.mxu0
        %998 = vdwg.mxu0
        %v999 = vld [vmem:[%s9] sm:$0x1]
        %v1001 = vperm.slane %v999, 0
        %v1003 = vadd.f32 %v996, %v1001
        %v1004 = vadd.f32 %v629, %v1003
        %v1005 = vld [vmem:[%s14] sm:$0x1]
        %v1006 = vld [vmem:[%s15] sm:$0x1]
        %v1007 = vsel %vm651, %v1004, 0.0
        %1008 = vadd.xlane.f32.xlu0 %v1007
        %v1009 = vpop.xlane.xlu0 %1008
        %v1010 = vrcp.pop 32.0
        %v1011 = vmul.f32 32.0, %v1010
        %v1012 = vsub.f32 1.0, %v1011
        %v1013 = vmul.f32 %v1010, %v1012
        %v1014 = vadd.f32 %v1010, %v1013
        %vm1015 = vweird.f32 %v1010
        %v1016 = vsel %vm1015, %v1010, %v1014
        %v1017 = vmul.f32 %v1009, %v1016
        %v1018 = vsub.f32 %v1004, %v1017
        %v1019 = vmul.f32 %v1018, %v1018
        %v1020 = vsel %vm651, %v1019, 0.0
        %1021 = vadd.xlane.f32.xlu0 %v1020
        %v1022 = vpop.xlane.xlu0 %1021
        %v1023 = vmul.f32 %v1022, %v1016
        %v1024 = vadd.f32 %v1023, 1e-05
        %v1025 = vrsqrt.pop %v1024
        %v1026 = vmul.f32 %v1025, %v1024
        %v1027 = vmul.f32 %v1026, %v1025
        %v1028 = vmul.f32 0.5, %v1027
        %v1029 = vsub.f32 1.5, %v1028
        %v1030 = vmul.f32 %v1025, %v1029
        %vm1031 = vweird.f32 %v1024
        %vm1032 = vweird.f32 %v1025
        %vm1033 = vmor %vm1031, %vm1032
        %v1034 = vsel %vm1033, %v1025, %v1030
        %v1035 = vmul.f32 %v1018, %v1034
        %v1037 = vperm.slane %v1005, 0
        %v1039 = vmul.f32 %v1035, %v1037
        %v1041 = vperm.slane %v1006, 0
        %v1043 = vadd.f32 %v1039, %v1041
        %v1044 = vpack.c.bf16 %v1043, %v1043
        %v1045 = vld [vmem:[%s10] sm:$0xf]
        %v1046 = vld [vmem:[%s10 + $0x4] sm:$0xf]
        %v1047 = vld [vmem:[%s10 + $0x8] sm:$0xf]
        %v1048 = vld [vmem:[%s10 + $0xc] sm:$0xf]
        %v1049 = vld [vmem:[%s11] sm:$0x1]
        %v1051 = vperm.slane %v1049, 0
        %v1057 = vunpack.c.l.b16 %v1045
        %v1058 = vunpack.c.l.b16 %v1046
        %v1059 = vunpack.c.l.b16 %v1047
        %v1060 = vunpack.c.l.b16 %v1048
        %v1061 = vpack.c.b16 %v1058, %v1057
        %v1062 = vpack.c.b16 %v1060, %v1059
        %v1066 = vsel %vm651, %v1044, 0
        %1068 = vmatpush.bf16.msra.mxu0 0
        %1069 = vmatpush.bf16.msra.mxu0 0
        %1070 = vmatpush.bf16.msra.mxu0 0
        %1071 = vmatpush.bf16.msra.mxu0 0
        %1072 = vmatpush.bf16.msra.mxu0 0
        %1073 = vmatpush.bf16.msra.mxu0 0
        %1074 = vmatpush.bf16.msra.mxu0 %v1062
        %1075 = vmatpush.bf16.msra.mxu0 %v1061
        %1076 = vmatmul.bf16.gmra.mxu0 %v1066
        %v1077 = vpop.f32.mrf.mxu0
        %v1078 = vadd.f32 %v1051, %v1077
        %v1079 = vpop.f32.mrf.mxu0
        %1080 = vdwg.mxu0
        %v1081 = vmax.f32 %v1078, 0.0
        %v1082 = vpack.c.bf16 %v1081, %v1081
        %v1083 = vld [vmem:[%s12] sm:$0xf]
        %v1084 = vld [vmem:[%s12 + $0x4] sm:$0xf]
        %v1085 = vld [vmem:[%s12 + $0x8] sm:$0xf]
        %v1086 = vld [vmem:[%s12 + $0xc] sm:$0xf]
        %v1087 = vld [vmem:[%s12 + $0x10] sm:$0xf]
        %v1088 = vld [vmem:[%s12 + $0x14] sm:$0xf]
        %v1089 = vld [vmem:[%s12 + $0x18] sm:$0xf]
        %v1090 = vld [vmem:[%s12 + $0x1c] sm:$0xf]
        %v1091 = vld [vmem:[%s13] sm:$0x1]
        %v1093 = vperm.slane %v1091, 0
        %v1103 = vunpack.c.l.b16 %v1083
        %v1104 = vunpack.c.l.b16 %v1084
        %v1105 = vunpack.c.l.b16 %v1085
        %v1106 = vunpack.c.l.b16 %v1086
        %v1107 = vunpack.c.l.b16 %v1087
        %v1108 = vunpack.c.l.b16 %v1088
        %v1109 = vunpack.c.l.b16 %v1089
        %v1110 = vunpack.c.l.b16 %v1090
        %v1111 = vpack.c.b16 %v1104, %v1103
        %v1112 = vpack.c.b16 %v1106, %v1105
        %v1113 = vpack.c.b16 %v1108, %v1107
        %v1114 = vpack.c.b16 %v1110, %v1109
        %vm1119 = vcmask 523264
        %v1121 = vsel %vm1119, %v1082, 0
        %1123 = vmatpush.bf16.msra.mxu0 0
        %1124 = vmatpush.bf16.msra.mxu0 0
        %1125 = vmatpush.bf16.msra.mxu0 0
        %1126 = vmatpush.bf16.msra.mxu0 0
        %1127 = vmatpush.bf16.msra.mxu0 %v1114
        %1128 = vmatpush.bf16.msra.mxu0 %v1113
        %1129 = vmatpush.bf16.msra.mxu0 %v1112
        %1130 = vmatpush.bf16.msra.mxu0 %v1111
        %1131 = vmatmul.bf16.gmra.mxu0 %v1121
        %v1132 = vpop.f32.mrf.mxu0
        %v1133 = vadd.f32 %v1093, %v1132
        %v1134 = vpop.f32.mrf.mxu0
        %1135 = vdwg.mxu0
        %v1136 = vadd.f32 %v1043, %v1133
        %v1137 = vld [vmem:[%s16] sm:$0x1]
        %v1138 = vld [vmem:[%s17] sm:$0x1]
        %v1139 = vsel %vm651, %v1136, 0.0
        %1140 = vadd.xlane.f32.xlu0 %v1139
        %v1141 = vpop.xlane.xlu0 %1140
        %v1142 = vmul.f32 %v1141, %v1016
        %v1143 = vsub.f32 %v1136, %v1142
        %v1144 = vmul.f32 %v1143, %v1143
        %v1145 = vsel %vm651, %v1144, 0.0
        %1146 = vadd.xlane.f32.xlu0 %v1145
        %v1147 = vpop.xlane.xlu0 %1146
        %v1148 = vmul.f32 %v1147, %v1016
        %v1149 = vadd.f32 %v1148, 1e-05
        %v1150 = vrsqrt.pop %v1149
        %v1151 = vmul.f32 %v1150, %v1149
        %v1152 = vmul.f32 %v1151, %v1150
        %v1153 = vmul.f32 0.5, %v1152
        %v1154 = vsub.f32 1.5, %v1153
        %v1155 = vmul.f32 %v1150, %v1154
        %vm1156 = vweird.f32 %v1149
        %vm1157 = vweird.f32 %v1150
        %vm1158 = vmor %vm1156, %vm1157
        %v1159 = vsel %vm1158, %v1150, %v1155
        %v1160 = vmul.f32 %v1143, %v1159
        %v1162 = vperm.slane %v1137, 0
        %v1164 = vmul.f32 %v1160, %v1162
        %v1166 = vperm.slane %v1138, 0
        %v1168 = vadd.f32 %v1164, %v1166
        %v1169 = vpack.c.bf16 %v1168, %v1168
        %s1170 = scalar_lea.vmem %s2, 32
        %v1171 = vld [vmem:[%s1170] sm:$0xf]
        %v1172 = vld [vmem:[%s1170 + $0x4] sm:$0xf]
        %v1173 = vld [vmem:[%s1170 + $0x8] sm:$0xf]
        %v1174 = vld [vmem:[%s1170 + $0xc] sm:$0xf]
        %s1175 = scalar_lea.vmem %s3, 2
        %v1176 = vld [vmem:[%s1175] sm:$0x1]
        %v1178 = vperm.slane %v1176, 0
        %v1184 = vunpack.c.l.b16 %v1171
        %v1185 = vunpack.c.l.b16 %v1172
        %v1186 = vunpack.c.l.b16 %v1173
        %v1187 = vunpack.c.l.b16 %v1174
        %v1188 = vpack.c.b16 %v1185, %v1184
        %v1189 = vpack.c.b16 %v1187, %v1186
        %v1193 = vsel %vm651, %v1169, 0
        %1195 = vmatpush.bf16.msra.mxu0 0
        %1196 = vmatpush.bf16.msra.mxu0 0
        %1197 = vmatpush.bf16.msra.mxu0 0
        %1198 = vmatpush.bf16.msra.mxu0 0
        %1199 = vmatpush.bf16.msra.mxu0 0
        %1200 = vmatpush.bf16.msra.mxu0 0
        %1201 = vmatpush.bf16.msra.mxu0 %v1189
        %1202 = vmatpush.bf16.msra.mxu0 %v1188
        %1203 = vmatmul.bf16.gmra.mxu0 %v1193
        %v1204 = vpop.f32.mrf.mxu0
        %v1205 = vadd.f32 %v1178, %v1204
        %v1206 = vpop.f32.mrf.mxu0
        %1207 = vdwg.mxu0
        %s1208 = scalar_lea.vmem %s4, 32
        %v1209 = vld [vmem:[%s1208] sm:$0xf]
        %v1210 = vld [vmem:[%s1208 + $0x4] sm:$0xf]
        %v1211 = vld [vmem:[%s1208 + $0x8] sm:$0xf]
        %v1212 = vld [vmem:[%s1208 + $0xc] sm:$0xf]
        %s1213 = scalar_lea.vmem %s5, 2
        %v1214 = vld [vmem:[%s1213] sm:$0x1]
        %v1216 = vperm.slane %v1214, 0
        %v1222 = vunpack.c.l.b16 %v1209
        %v1223 = vunpack.c.l.b16 %v1210
        %v1224 = vunpack.c.l.b16 %v1211
        %v1225 = vunpack.c.l.b16 %v1212
        %v1226 = vpack.c.b16 %v1223, %v1222
        %v1227 = vpack.c.b16 %v1225, %v1224
        %1230 = vmatpush.bf16.msra.mxu0 0
        %1231 = vmatpush.bf16.msra.mxu0 0
        %1232 = vmatpush.bf16.msra.mxu0 0
        %1233 = vmatpush.bf16.msra.mxu0 0
        %1234 = vmatpush.bf16.msra.mxu0 0
        %1235 = vmatpush.bf16.msra.mxu0 0
        %1236 = vmatpush.bf16.msra.mxu0 %v1227
        %1237 = vmatpush.bf16.msra.mxu0 %v1226
        %1238 = vmatmul.bf16.gmra.mxu0 %v1193
        %v1239 = vpop.f32.mrf.mxu0
        %v1240 = vadd.f32 %v1216, %v1239
        %v1241 = vpop.f32.mrf.mxu0
        %1242 = vdwg.mxu0
        %s1243 = scalar_lea.vmem %s6, 32
        %v1244 = vld [vmem:[%s1243] sm:$0xf]
        %v1245 = vld [vmem:[%s1243 + $0x4] sm:$0xf]
        %v1246 = vld [vmem:[%s1243 + $0x8] sm:$0xf]
        %v1247 = vld [vmem:[%s1243 + $0xc] sm:$0xf]
        %s1248 = scalar_lea.vmem %s7, 2
        %v1249 = vld [vmem:[%s1248] sm:$0x1]
        %v1251 = vperm.slane %v1249, 0
        %v1257 = vunpack.c.l.b16 %v1244
        %v1258 = vunpack.c.l.b16 %v1245
        %v1259 = vunpack.c.l.b16 %v1246
        %v1260 = vunpack.c.l.b16 %v1247
        %v1261 = vpack.c.b16 %v1258, %v1257
        %v1262 = vpack.c.b16 %v1260, %v1259
        %1265 = vmatpush.bf16.msra.mxu0 0
        %1266 = vmatpush.bf16.msra.mxu0 0
        %1267 = vmatpush.bf16.msra.mxu0 0
        %1268 = vmatpush.bf16.msra.mxu0 0
        %1269 = vmatpush.bf16.msra.mxu0 0
        %1270 = vmatpush.bf16.msra.mxu0 0
        %1271 = vmatpush.bf16.msra.mxu0 %v1262
        %1272 = vmatpush.bf16.msra.mxu0 %v1261
        %1273 = vmatmul.bf16.gmra.mxu0 %v1193
        %v1274 = vpop.f32.mrf.mxu0
        %v1275 = vadd.f32 %v1251, %v1274
        %v1276 = vpop.f32.mrf.mxu0
        %1277 = vdwg.mxu0
        %v1278 = vpack.c.bf16 %v1205, %v1205
        %v1279 = vpack.c.bf16 %v1240, %v1240
        %v1281 = vsel %vm736, %v1278, 0
        %v1284 = vsel %vm736, %v1279, 0
        %1286 = vmatpush.bf16.xpose.msra.mxu0 0
        %1287 = vmatpush.bf16.xpose.msra.mxu0 0
        %1288 = vmatpush.bf16.xpose.msra.mxu0 0
        %1289 = vmatpush.bf16.xpose.msra.mxu0 0
        %1290 = vmatpush.bf16.xpose.msra.mxu0 0
        %1291 = vmatpush.bf16.xpose.msra.mxu0 0
        %1292 = vmatpush.bf16.xpose.msra.mxu0 0
        %1293 = vmatpush.bf16.xpose.msra.mxu0 %v1284
        %1294 = vmatmul.bf16.gmra.mxu0 %v1281
        %v1295 = vpop.f32.mrf.mxu0
        %v1296 = vadd.f32 0.0, %v1295
        %v1297 = vpop.f32.mrf.mxu0
        %1298 = vdwg.mxu0
        %v1299 = vsel %vm756, %v1296, -inf
        %1300 = vmax.xlane.f32.xlu0 %v1299
        %v1301 = vpop.xlane.xlu0 %1300
        %v1302 = vsub.f32 %v1296, %v1301
        %v1303 = vmul.f32 %v1302, 1.442695
        %v1304 = vpow.pop %v1303
        %v1305 = vsel %vm756, %v1304, 0.0
        %1306 = vadd.xlane.f32.xlu0 %v1305
        %v1307 = vpop.xlane.xlu0 %1306
        %v1308 = vrcp.pop %v1307
        %v1309 = vmul.f32 %v1304, %v1308
        %v1310 = vpack.c.bf16 %v1309, %v1309
        %v1311 = vpack.c.bf16 %v1275, %v1275
        %v1313 = vsel %vm756, %v1310, 0
        %v1316 = vsel %vm773, %v1311, 0
        %1318 = vmatpush.bf16.msra.mxu0 0
        %1319 = vmatpush.bf16.msra.mxu0 0
        %1320 = vmatpush.bf16.msra.mxu0 0
        %1321 = vmatpush.bf16.msra.mxu0 0
        %1322 = vmatpush.bf16.msra.mxu0 0
        %1323 = vmatpush.bf16.msra.mxu0 0
        %1324 = vmatpush.bf16.msra.mxu0 0
        %1325 = vmatpush.bf16.msra.mxu0 %v1316
        %1326 = vmatmul.bf16.gmra.mxu0 %v1313
        %v1327 = vpop.f32.mrf.mxu0
        %v1328 = vadd.f32 0.0, %v1327
        %v1329 = vpop.f32.mrf.mxu0
        %1330 = vdwg.mxu0
        %v1331 = vpack.c.bf16 %v1328, %v1328
        %s1332 = scalar_lea.vmem %s8, 16
        %v1333 = vld [vmem:[%s1332] sm:$0xf]
        %v1334 = vld [vmem:[%s1332 + $0x4] sm:$0xf]
        %s1335 = scalar_lea.vmem %s2, 48
        %v1336 = vld [vmem:[%s1335] sm:$0xf]
        %v1337 = vld [vmem:[%s1335 + $0x4] sm:$0xf]
        %v1338 = vld [vmem:[%s1335 + $0x8] sm:$0xf]
        %v1339 = vld [vmem:[%s1335 + $0xc] sm:$0xf]
        %s1340 = scalar_lea.vmem %s3, 3
        %v1341 = vld [vmem:[%s1340] sm:$0x1]
        %v1343 = vperm.slane %v1341, 0
        %v1349 = vunpack.c.l.b16 %v1336
        %v1350 = vunpack.c.l.b16 %v1337
        %v1351 = vunpack.c.l.b16 %v1338
        %v1352 = vunpack.c.l.b16 %v1339
        %v1353 = vpack.c.b16 %v1350, %v1349
        %v1354 = vpack.c.b16 %v1352, %v1351
        %1357 = vmatpush.bf16.msra.mxu0 0
        %1358 = vmatpush.bf16.msra.mxu0 0
        %1359 = vmatpush.bf16.msra.mxu0 0
        %1360 = vmatpush.bf16.msra.mxu0 0
        %1361 = vmatpush.bf16.msra.mxu0 0
        %1362 = vmatpush.bf16.msra.mxu0 0
        %1363 = vmatpush.bf16.msra.mxu0 %v1354
        %1364 = vmatpush.bf16.msra.mxu0 %v1353
        %1365 = vmatmul.bf16.gmra.mxu0 %v1193
        %v1366 = vpop.f32.mrf.mxu0
        %v1367 = vadd.f32 %v1343, %v1366
        %v1368 = vpop.f32.mrf.mxu0
        %1369 = vdwg.mxu0
        %s1370 = scalar_lea.vmem %s4, 48
        %v1371 = vld [vmem:[%s1370] sm:$0xf]
        %v1372 = vld [vmem:[%s1370 + $0x4] sm:$0xf]
        %v1373 = vld [vmem:[%s1370 + $0x8] sm:$0xf]
        %v1374 = vld [vmem:[%s1370 + $0xc] sm:$0xf]
        %s1375 = scalar_lea.vmem %s5, 3
        %v1376 = vld [vmem:[%s1375] sm:$0x1]
        %v1378 = vperm.slane %v1376, 0
        %v1384 = vunpack.c.l.b16 %v1371
        %v1385 = vunpack.c.l.b16 %v1372
        %v1386 = vunpack.c.l.b16 %v1373
        %v1387 = vunpack.c.l.b16 %v1374
        %v1388 = vpack.c.b16 %v1385, %v1384
        %v1389 = vpack.c.b16 %v1387, %v1386
        %1392 = vmatpush.bf16.msra.mxu0 0
        %1393 = vmatpush.bf16.msra.mxu0 0
        %1394 = vmatpush.bf16.msra.mxu0 0
        %1395 = vmatpush.bf16.msra.mxu0 0
        %1396 = vmatpush.bf16.msra.mxu0 0
        %1397 = vmatpush.bf16.msra.mxu0 0
        %1398 = vmatpush.bf16.msra.mxu0 %v1389
        %1399 = vmatpush.bf16.msra.mxu0 %v1388
        %1400 = vmatmul.bf16.gmra.mxu0 %v1193
        %v1401 = vpop.f32.mrf.mxu0
        %v1402 = vadd.f32 %v1378, %v1401
        %v1403 = vpop.f32.mrf.mxu0
        %1404 = vdwg.mxu0
        %s1405 = scalar_lea.vmem %s6, 48
        %v1406 = vld [vmem:[%s1405] sm:$0xf]
        %v1407 = vld [vmem:[%s1405 + $0x4] sm:$0xf]
        %v1408 = vld [vmem:[%s1405 + $0x8] sm:$0xf]
        %v1409 = vld [vmem:[%s1405 + $0xc] sm:$0xf]
        %s1410 = scalar_lea.vmem %s7, 3
        %v1411 = vld [vmem:[%s1410] sm:$0x1]
        %v1413 = vperm.slane %v1411, 0
        %v1419 = vunpack.c.l.b16 %v1406
        %v1420 = vunpack.c.l.b16 %v1407
        %v1421 = vunpack.c.l.b16 %v1408
        %v1422 = vunpack.c.l.b16 %v1409
        %v1423 = vpack.c.b16 %v1420, %v1419
        %v1424 = vpack.c.b16 %v1422, %v1421
        %1427 = vmatpush.bf16.msra.mxu0 0
        %1428 = vmatpush.bf16.msra.mxu0 0
        %1429 = vmatpush.bf16.msra.mxu0 0
        %1430 = vmatpush.bf16.msra.mxu0 0
        %1431 = vmatpush.bf16.msra.mxu0 0
        %1432 = vmatpush.bf16.msra.mxu0 0
        %1433 = vmatpush.bf16.msra.mxu0 %v1424
        %1434 = vmatpush.bf16.msra.mxu0 %v1423
        %1435 = vmatmul.bf16.gmra.mxu0 %v1193
        %v1436 = vpop.f32.mrf.mxu0
        %v1437 = vadd.f32 %v1413, %v1436
        %v1438 = vpop.f32.mrf.mxu0
        %1439 = vdwg.mxu0
        %v1440 = vpack.c.bf16 %v1367, %v1367
        %v1441 = vpack.c.bf16 %v1402, %v1402
        %v1443 = vsel %vm736, %v1440, 0
        %v1446 = vsel %vm736, %v1441, 0
        %1448 = vmatpush.bf16.xpose.msra.mxu0 0
        %1449 = vmatpush.bf16.xpose.msra.mxu0 0
        %1450 = vmatpush.bf16.xpose.msra.mxu0 0
        %1451 = vmatpush.bf16.xpose.msra.mxu0 0
        %1452 = vmatpush.bf16.xpose.msra.mxu0 0
        %1453 = vmatpush.bf16.xpose.msra.mxu0 0
        %1454 = vmatpush.bf16.xpose.msra.mxu0 0
        %1455 = vmatpush.bf16.xpose.msra.mxu0 %v1446
        %1456 = vmatmul.bf16.gmra.mxu0 %v1443
        %v1457 = vpop.f32.mrf.mxu0
        %v1458 = vadd.f32 0.0, %v1457
        %v1459 = vpop.f32.mrf.mxu0
        %1460 = vdwg.mxu0
        %v1461 = vsel %vm756, %v1458, -inf
        %1462 = vmax.xlane.f32.xlu0 %v1461
        %v1463 = vpop.xlane.xlu0 %1462
        %v1464 = vsub.f32 %v1458, %v1463
        %v1465 = vmul.f32 %v1464, 1.442695
        %v1466 = vpow.pop %v1465
        %v1467 = vsel %vm756, %v1466, 0.0
        %1468 = vadd.xlane.f32.xlu0 %v1467
        %v1469 = vpop.xlane.xlu0 %1468
        %v1470 = vrcp.pop %v1469
        %v1471 = vmul.f32 %v1466, %v1470
        %v1472 = vpack.c.bf16 %v1471, %v1471
        %v1473 = vpack.c.bf16 %v1437, %v1437
        %v1475 = vsel %vm756, %v1472, 0
        %v1478 = vsel %vm773, %v1473, 0
        %1480 = vmatpush.bf16.msra.mxu0 0
        %1481 = vmatpush.bf16.msra.mxu0 0
        %1482 = vmatpush.bf16.msra.mxu0 0
        %1483 = vmatpush.bf16.msra.mxu0 0
        %1484 = vmatpush.bf16.msra.mxu0 0
        %1485 = vmatpush.bf16.msra.mxu0 0
        %1486 = vmatpush.bf16.msra.mxu0 0
        %1487 = vmatpush.bf16.msra.mxu0 %v1478
        %1488 = vmatmul.bf16.gmra.mxu0 %v1475
        %v1489 = vpop.f32.mrf.mxu0
        %v1490 = vadd.f32 0.0, %v1489
        %v1491 = vpop.f32.mrf.mxu0
        %1492 = vdwg.mxu0
        %v1493 = vpack.c.bf16 %v1490, %v1490
        %s1494 = scalar_lea.vmem %s8, 24
        %v1495 = vld [vmem:[%s1494] sm:$0xf]
        %v1496 = vld [vmem:[%s1494 + $0x4] sm:$0xf]
        %v1499 = vunpack.c.l.b16 %v1495
        %v1500 = vunpack.c.l.b16 %v1496
        %v1501 = vpack.c.b16 %v1500, %v1499
        %v1504 = vsel %vm736, %v1493, 0
        %1506 = vmatpush.bf16.msra.mxu0 0
        %1507 = vmatpush.bf16.msra.mxu0 0
        %1508 = vmatpush.bf16.msra.mxu0 0
        %1509 = vmatpush.bf16.msra.mxu0 0
        %1510 = vmatpush.bf16.msra.mxu0 0
        %1511 = vmatpush.bf16.msra.mxu0 0
        %1512 = vmatpush.bf16.msra.mxu0 0
        %1513 = vmatpush.bf16.msra.mxu0 %v1501
        %1514 = vmatmul.bf16.gmra.mxu0 %v1504
        %v1515 = vpop.f32.mrf.mxu0
        %v1516 = vadd.f32 0.0, %v1515
        %v1517 = vpop.f32.mrf.mxu0
        %1518 = vdwg.mxu0
        %v1521 = vunpack.c.l.b16 %v1333
        %v1522 = vunpack.c.l.b16 %v1334
        %v1523 = vpack.c.b16 %v1522, %v1521
        %v1526 = vsel %vm736, %v1331, 0
        %1528 = vmatpush.bf16.msra.mxu0 0
        %1529 = vmatpush.bf16.msra.mxu0 0
        %1530 = vmatpush.bf16.msra.mxu0 0
        %1531 = vmatpush.bf16.msra.mxu0 0
        %1532 = vmatpush.bf16.msra.mxu0 0
        %1533 = vmatpush.bf16.msra.mxu0 0
        %1534 = vmatpush.bf16.msra.mxu0 0
        %1535 = vmatpush.bf16.msra.mxu0 %v1523
        %1536 = vmatmul.bf16.gmra.mxu0 %v1526
        %v1537 = vpop.f32.mrf.mxu0
        %v1538 = vadd.f32 %v1516, %v1537
        %v1539 = vpop.f32.mrf.mxu0
        %1540 = vdwg.mxu0
        %s1541 = scalar_lea.vmem %s9, 1
        %v1542 = vld [vmem:[%s1541] sm:$0x1]
        %v1544 = vperm.slane %v1542, 0
        %v1546 = vadd.f32 %v1538, %v1544
        %v1547 = vadd.f32 %v1168, %v1546
        %s1548 = scalar_lea.vmem %s14, 1
        %v1549 = vld [vmem:[%s1548] sm:$0x1]
        %s1550 = scalar_lea.vmem %s15, 1
        %v1551 = vld [vmem:[%s1550] sm:$0x1]
        %v1552 = vsel %vm651, %v1547, 0.0
        %1553 = vadd.xlane.f32.xlu0 %v1552
        %v1554 = vpop.xlane.xlu0 %1553
        %v1555 = vmul.f32 %v1554, %v1016
        %v1556 = vsub.f32 %v1547, %v1555
        %v1557 = vmul.f32 %v1556, %v1556
        %v1558 = vsel %vm651, %v1557, 0.0
        %1559 = vadd.xlane.f32.xlu0 %v1558
        %v1560 = vpop.xlane.xlu0 %1559
        %v1561 = vmul.f32 %v1560, %v1016
        %v1562 = vadd.f32 %v1561, 1e-05
        %v1563 = vrsqrt.pop %v1562
        %v1564 = vmul.f32 %v1563, %v1562
        %v1565 = vmul.f32 %v1564, %v1563
        %v1566 = vmul.f32 0.5, %v1565
        %v1567 = vsub.f32 1.5, %v1566
        %v1568 = vmul.f32 %v1563, %v1567
        %vm1569 = vweird.f32 %v1562
        %vm1570 = vweird.f32 %v1563
        %vm1571 = vmor %vm1569, %vm1570
        %v1572 = vsel %vm1571, %v1563, %v1568
        %v1573 = vmul.f32 %v1556, %v1572
        %v1575 = vperm.slane %v1549, 0
        %v1577 = vmul.f32 %v1573, %v1575
        %v1579 = vperm.slane %v1551, 0
        %v1581 = vadd.f32 %v1577, %v1579
        %v1582 = vpack.c.bf16 %v1581, %v1581
        %s1583 = scalar_lea.vmem %s10, 16
        %v1584 = vld [vmem:[%s1583] sm:$0xf]
        %v1585 = vld [vmem:[%s1583 + $0x4] sm:$0xf]
        %v1586 = vld [vmem:[%s1583 + $0x8] sm:$0xf]
        %v1587 = vld [vmem:[%s1583 + $0xc] sm:$0xf]
        %s1588 = scalar_lea.vmem %s11, 1
        %v1589 = vld [vmem:[%s1588] sm:$0x1]
        %v1591 = vperm.slane %v1589, 0
        %v1597 = vunpack.c.l.b16 %v1584
        %v1598 = vunpack.c.l.b16 %v1585
        %v1599 = vunpack.c.l.b16 %v1586
        %v1600 = vunpack.c.l.b16 %v1587
        %v1601 = vpack.c.b16 %v1598, %v1597
        %v1602 = vpack.c.b16 %v1600, %v1599
        %v1606 = vsel %vm651, %v1582, 0
        %1608 = vmatpush.bf16.msra.mxu0 0
        %1609 = vmatpush.bf16.msra.mxu0 0
        %1610 = vmatpush.bf16.msra.mxu0 0
        %1611 = vmatpush.bf16.msra.mxu0 0
        %1612 = vmatpush.bf16.msra.mxu0 0
        %1613 = vmatpush.bf16.msra.mxu0 0
        %1614 = vmatpush.bf16.msra.mxu0 %v1602
        %1615 = vmatpush.bf16.msra.mxu0 %v1601
        %1616 = vmatmul.bf16.gmra.mxu0 %v1606
        %v1617 = vpop.f32.mrf.mxu0
        %v1618 = vadd.f32 %v1591, %v1617
        %v1619 = vpop.f32.mrf.mxu0
        %1620 = vdwg.mxu0
        %v1621 = vmax.f32 %v1618, 0.0
        %v1622 = vpack.c.bf16 %v1621, %v1621
        %s1623 = scalar_lea.vmem %s12, 32
        %v1624 = vld [vmem:[%s1623] sm:$0xf]
        %v1625 = vld [vmem:[%s1623 + $0x4] sm:$0xf]
        %v1626 = vld [vmem:[%s1623 + $0x8] sm:$0xf]
        %v1627 = vld [vmem:[%s1623 + $0xc] sm:$0xf]
        %v1628 = vld [vmem:[%s1623 + $0x10] sm:$0xf]
        %v1629 = vld [vmem:[%s1623 + $0x14] sm:$0xf]
        %v1630 = vld [vmem:[%s1623 + $0x18] sm:$0xf]
        %v1631 = vld [vmem:[%s1623 + $0x1c] sm:$0xf]
        %s1632 = scalar_lea.vmem %s13, 1
        %v1633 = vld [vmem:[%s1632] sm:$0x1]
        %v1635 = vperm.slane %v1633, 0
        %v1645 = vunpack.c.l.b16 %v1624
        %v1646 = vunpack.c.l.b16 %v1625
        %v1647 = vunpack.c.l.b16 %v1626
        %v1648 = vunpack.c.l.b16 %v1627
        %v1649 = vunpack.c.l.b16 %v1628
        %v1650 = vunpack.c.l.b16 %v1629
        %v1651 = vunpack.c.l.b16 %v1630
        %v1652 = vunpack.c.l.b16 %v1631
        %v1653 = vpack.c.b16 %v1646, %v1645
        %v1654 = vpack.c.b16 %v1648, %v1647
        %v1655 = vpack.c.b16 %v1650, %v1649
        %v1656 = vpack.c.b16 %v1652, %v1651
        %v1662 = vsel %vm1119, %v1622, 0
        %1664 = vmatpush.bf16.msra.mxu0 0
        %1665 = vmatpush.bf16.msra.mxu0 0
        %1666 = vmatpush.bf16.msra.mxu0 0
        %1667 = vmatpush.bf16.msra.mxu0 0
        %1668 = vmatpush.bf16.msra.mxu0 %v1656
        %1669 = vmatpush.bf16.msra.mxu0 %v1655
        %1670 = vmatpush.bf16.msra.mxu0 %v1654
        %1671 = vmatpush.bf16.msra.mxu0 %v1653
        %1672 = vmatmul.bf16.gmra.mxu0 %v1662
        %v1673 = vpop.f32.mrf.mxu0
        %v1674 = vadd.f32 %v1635, %v1673
        %v1675 = vpop.f32.mrf.mxu0
        %1676 = vdwg.mxu0
        %v1677 = vadd.f32 %v1581, %v1674
        %s1678 = scalar_lea.vmem %s16, 1
        %v1679 = vld [vmem:[%s1678] sm:$0x1]
        %s1680 = scalar_lea.vmem %s17, 1
        %v1681 = vld [vmem:[%s1680] sm:$0x1]
        %v1682 = vsel %vm651, %v1677, 0.0
        %1683 = vadd.xlane.f32.xlu0 %v1682
        %v1684 = vpop.xlane.xlu0 %1683
        %v1685 = vmul.f32 %v1684, %v1016
        %v1686 = vsub.f32 %v1677, %v1685
        %v1687 = vmul.f32 %v1686, %v1686
        %v1688 = vsel %vm651, %v1687, 0.0
        %1689 = vadd.xlane.f32.xlu0 %v1688
        %v1690 = vpop.xlane.xlu0 %1689
        %v1691 = vmul.f32 %v1690, %v1016
        %v1692 = vadd.f32 %v1691, 1e-05
        %v1693 = vrsqrt.pop %v1692
        %v1694 = vmul.f32 %v1693, %v1692
        %v1695 = vmul.f32 %v1694, %v1693
        %v1696 = vmul.f32 0.5, %v1695
        %v1697 = vsub.f32 1.5, %v1696
        %v1698 = vmul.f32 %v1693, %v1697
        %vm1699 = vweird.f32 %v1692
        %vm1700 = vweird.f32 %v1693
        %vm1701 = vmor %vm1699, %vm1700
        %v1702 = vsel %vm1701, %v1693, %v1698
        %v1703 = vmul.f32 %v1686, %v1702
        %v1705 = vperm.slane %v1679, 0
        %v1707 = vmul.f32 %v1703, %v1705
        %v1709 = vperm.slane %v1681, 0
        %v1711 = vadd.f32 %v1707, %v1709
        %v1712 = vpack.c.bf16 %v1711, %v1711
        %v1713 = vld [vmem:[%s18] sm:$0xf]
        %v1714 = vld [vmem:[%s18 + $0x4] sm:$0xf]
        %v1715 = vld [vmem:[%s18 + $0x8] sm:$0xf]
        %v1716 = vld [vmem:[%s18 + $0xc] sm:$0xf]
        %v1717 = vld [vmem:[%s19] sm:$0x1]
        %v1719 = vperm.slane %v1717, 0
        %v1725 = vunpack.c.l.b16 %v1713
        %v1726 = vunpack.c.l.b16 %v1714
        %v1727 = vunpack.c.l.b16 %v1715
        %v1728 = vunpack.c.l.b16 %v1716
        %v1729 = vpack.c.b16 %v1726, %v1725
        %v1730 = vpack.c.b16 %v1728, %v1727
        %v1734 = vsel %vm651, %v1712, 0
        %1736 = vmatpush.bf16.msra.mxu0 0
        %1737 = vmatpush.bf16.msra.mxu0 0
        %1738 = vmatpush.bf16.msra.mxu0 0
        %1739 = vmatpush.bf16.msra.mxu0 0
        %1740 = vmatpush.bf16.msra.mxu0 0
        %1741 = vmatpush.bf16.msra.mxu0 0
        %1742 = vmatpush.bf16.msra.mxu0 %v1730
        %1743 = vmatpush.bf16.msra.mxu0 %v1729
        %1744 = vmatmul.bf16.gmra.mxu0 %v1734
        %v1745 = vpop.f32.mrf.mxu0
        %v1746 = vadd.f32 %v1719, %v1745
        %v1747 = vpop.f32.mrf.mxu0
        %1748 = vdwg.mxu0
        %1749 = vst [vmem:[%s620] sm:$0xff] %v1746
        %s1750 = sand.u32 %s467, 1
        %s1751 = scalar_lea.sflag [#allocation3], %s1750
        %s1752 = sand.u32 %s467, 1
        %s1753 = smul.addr %s1752, 8
        %s1754 = scalar_lea.vmem [#allocation2], %s1753
        // Predicated region
        $region101: #{tpu_custom_call.1} parent=99 // pred_check
          %p1755 = pneg %p477
        $region102: #{tpu_custom_call.1} parent=99 // pred_check_branch
          %1757 = sbr.rel (%p1755) target = $region104
        $region103: #{tpu_custom_call.1} parent=99 // pred_region
          %1759 = vsyncadd %s1751, 0
          %s1760 = smul.addr %s34, 8
          %s1761 = scalar_lea.hbm %s20, %s1760
          %s1763 = sshll.u32 %s1754, 4
          %s1764 = int_to_ptr.vmem [resolvable:$true] %s1763
          %s1765 = sshll.u32 %s1761, 4
          %s1766 = int_to_ptr.hbm [resolvable:$true] %s1765
          %1768 = dma.vmem_to_hbm [thread:$0]  %s1764, 128, %s1766, %s1751
        $region104: #{tpu_custom_call.1} parent=99 // pred_fallthru
          _
      $region100: #{tpu_custom_call.1} parent=5 // pred_fallthru
        _
      %p1769 = scmp.le.s32.totalorder 2, %s29
      // Predicated region
      $region105: #{tpu_custom_call.1} parent=5 // pred_check
        %p1770 = pneg %p1769
      $region106: #{tpu_custom_call.1} parent=5 // pred_check_branch
        %1772 = sbr.rel (%p1770) target = $region108
      $region107: #{tpu_custom_call.1} parent=5 // pred_region
        %s1773 = ssub.s32 %s29, 2
        // Predicated region
        $region109: #{tpu_custom_call.1} parent=107 // pred_check
          %p1774 = pneg %p483
        $region110: #{tpu_custom_call.1} parent=107 // pred_check_branch
          %1776 = sbr.rel (%p1774) target = $region112
        $region111: #{tpu_custom_call.1} parent=107 // pred_region
          %s1777 = sand.u32 %s468, 1
          %s1778 = scalar_lea.sflag [#allocation3], %s1777
          %s1779 = sand.u32 %s468, 1
          %s1780 = smul.addr %s1779, 8
          %s1781 = scalar_lea.vmem [#allocation2], %s1780
          %1783 = dma.done %s1778, 128
        $region112: #{tpu_custom_call.1} parent=107 // pred_fallthru
          _
      $region108: #{tpu_custom_call.1} parent=5 // pred_fallthru
        _
    $region6: #{tpu_custom_call.1} parent=1 // loop_footer
      %s33 = sadd.s32 1, %s29
    $region7: #{tpu_custom_call.1} parent=1 // loop_footer_branch
      %28 = sbr.rel target = $region3
    $region8: #{tpu_custom_call.1} parent=1 // loop_exit
      _
    %1784 = vsyncpa [#allocation3], 1
    %s1785 = scalar_lea.sflag [#allocation3], 1
    %1786 = vsyncpa %s1785, 1

</llo_original>
